<compile_context>
chip_gen: v7x
topology: tpu7x:2x2x1
jax: 0.10.0
libtpu: 0.0.40
codegen_flags: <defaults>
</compile_context>

<pallas_src>
import jax
import jax.numpy as jnp
from jax import lax
from jax.experimental import pallas as pl
from jax.experimental.pallas import tpu as pltpu

HIDDEN_SIZE = 10
INPUT_SIZE = 6
INTERMEDIATE_SIZE = 6
OUTPUT_SIZE = 3

GATE_PAD = 128   # each LSTM gate padded to its own 128-lane block
OUT_PAD = 128    # fused-linear output padded to a full lane block (unmasked vst)
SUBLANE = 8      # batch padded to a multiple of the 8-sublane vreg height


def lstm_mlp_kernel(x_ref, wih_ref, whh_ref, bias_ref, wfused_ref, bfused_ref,
                    out_ref, gx_ref):
    """Whole forward pass: LSTM over time, take last hidden, fused Linear tail.

    Refs (all VMEM, full arrays, no grid):
      x_ref      : (T*BP, I)           time-major, batch padded to BP
      wih_ref    : (I, 4*GATE_PAD)     input->gates, gate order [i,f,o,g], each
                                       gate in its own zero-padded 128-lane block
      whh_ref    : (GATE_PAD, 4*GATE_PAD)  hidden->gates, rows >= H are zero
      bias_ref   : (1, 4*GATE_PAD)     b_ih + b_hh in the padded gate layout
      wfused_ref : (GATE_PAD, OUT_PAD) W1^T @ W2^T (rows >= H zero, cols >= OUT zero)
      bfused_ref : (1, OUT_PAD)        b1 @ W2^T + b2 (zero-padded)
      out_ref    : (BP, OUT_PAD)
      gx_ref     : (T*BP, 4*GATE_PAD)  VMEM scratch for the hoisted input projection
    """
    bp = out_ref.shape[0]            # padded batch (multiple of 8)
    T = x_ref.shape[0] // bp
    GP = GATE_PAD

    # (1) Hoisted input projection + bias for ALL timesteps: one MXU matmul and one
    #     bias broadcast, outside the serial recurrence.
    gx_ref[...] = (jnp.dot(x_ref[...], wih_ref[...],
                           preferred_element_type=jnp.float32)
                   + bias_ref[...])

    # (2) Serial recurrence.  whh is NOT hoisted into vregs: indexing the ref each
    #     step lets Mosaic stream it from VMEM instead of spilling 64 live vregs.
    def step(t, carry):
        h, c = carry
        start = pl.multiple_of(t * bp, bp)
        gates = gx_ref[pl.ds(start, bp), :] + jnp.dot(
            h, whh_ref[...], preferred_element_type=jnp.float32)   # (BP, 4*GP)
        # Gate blocks are lane-aligned at 128: [ i | f | o | g ].
        # EUP ordering: only i, f, g are needed for c_new -> issue them first,
        # queue sigmoid(o) behind them so it overlaps the tanh(c_new) chain.
        if_g = jax.nn.sigmoid(gates[:, :2 * GP])                    # i, f
        g_g = jnp.tanh(gates[:, 3 * GP:])                           # g
        c_new = if_g[:, GP:2 * GP] * c + if_g[:, :GP] * g_g
        o_g = jax.nn.sigmoid(gates[:, 2 * GP:3 * GP])               # o (off chain)
        h_new = o_g * jnp.tanh(c_new)
        return (h_new, c_new)

    h0 = jnp.zeros((bp, GP), jnp.float32)
    c0 = jnp.zeros((bp, GP), jnp.float32)
    # T is small and static -> fully unroll so the LLO scheduler sees across steps.
    h_last, _ = lax.fori_loop(0, T, step, (h0, c0), unroll=True)

    # (3) Fused fc_intermediate + fc_output (no nonlinearity between them).
    out_ref[...] = (jnp.dot(h_last, wfused_ref[...],
                            preferred_element_type=jnp.float32)
                    + bfused_ref[...]).astype(out_ref.dtype)


def init_params(key, input_size=INPUT_SIZE, hidden_size=HIDDEN_SIZE,
                intermediate_size=INTERMEDIATE_SIZE, output_size=OUTPUT_SIZE):
    """Deterministic synthetic parameters with PyTorch-default-like uniform init."""
    ks = jax.random.split(key, 8)
    k_lstm = 1.0 / jnp.sqrt(hidden_size)

    def u(k, shape, bound):
        return jax.random.uniform(k, shape, jnp.float32, -bound, bound)

    w_ih = u(ks[0], (4 * hidden_size, input_size), k_lstm)    # (4H, I)
    w_hh = u(ks[1], (4 * hidden_size, hidden_size), k_lstm)   # (4H, H)
    b_ih = u(ks[2], (4 * hidden_size,), k_lstm)
    b_hh = u(ks[3], (4 * hidden_size,), k_lstm)

    k_fc1 = 1.0 / jnp.sqrt(hidden_size)
    w_fc1 = u(ks[4], (intermediate_size, hidden_size), k_fc1)  # (inter, H)
    b_fc1 = u(ks[5], (intermediate_size,), k_fc1)

    k_fc2 = 1.0 / jnp.sqrt(intermediate_size)
    w_fc2 = u(ks[6], (output_size, intermediate_size), k_fc2)  # (out, inter)
    b_fc2 = u(ks[7], (output_size,), k_fc2)

    return (w_ih, w_hh, b_ih, b_hh, w_fc1, b_fc1, w_fc2, b_fc2)


def _pack_gate_cols(w_t, h):
    """(rows, 4H) in PyTorch gate order [i,f,g,o] -> (rows, 4*GATE_PAD) in order
    [i,f,o,g], each gate zero-padded to its own 128-lane block."""
    blocks = []
    for g in (0, 1, 3, 2):                       # i, f, o, g
        blk = w_t[:, g * h:(g + 1) * h]
        blocks.append(jnp.pad(blk, ((0, 0), (0, GATE_PAD - h))))
    return jnp.concatenate(blocks, axis=1)


@jax.jit
def lstm_model_forward(x, params):
    """x: (B, T, I) float32, batch-first (same as the PyTorch module).
    Returns (B, OUTPUT_SIZE).  Whole wrapper is jitted so padding / transposes /
    weight packing fuse with the pallas_call instead of being separate dispatches."""
    B, T, I = x.shape
    H = HIDDEN_SIZE
    BP = ((B + SUBLANE - 1) // SUBLANE) * SUBLANE
    w_ih, w_hh, b_ih, b_hh, w_fc1, b_fc1, w_fc2, b_fc2 = params

    # Pre-transpose / reorder / pad parameters once, outside the kernel.
    wih_p = _pack_gate_cols(jnp.transpose(w_ih).astype(jnp.float32), H)      # (I, 4GP)
    whh_p = jnp.pad(_pack_gate_cols(jnp.transpose(w_hh).astype(jnp.float32), H),
                    ((0, GATE_PAD - H), (0, 0)))                             # (GP, 4GP)
    b_p = _pack_gate_cols((b_ih + b_hh)[None, :].astype(jnp.float32), H)     # (1, 4GP)

    # Fold the two activation-free Linears into one (exact composition).
    w1_t = jnp.transpose(w_fc1).astype(jnp.float32)                          # (H, inter)
    w2_t = jnp.transpose(w_fc2).astype(jnp.float32)                          # (inter, out)
    w_fused = jnp.dot(w1_t, w2_t, precision=lax.Precision.HIGHEST)           # (H, out)
    b_fused = (jnp.dot(b_fc1[None, :].astype(jnp.float32), w2_t,
                       precision=lax.Precision.HIGHEST)
               + b_fc2[None, :].astype(jnp.float32))                         # (1, out)
    w_fused_p = jnp.pad(w_fused, ((0, GATE_PAD - H), (0, OUT_PAD - OUTPUT_SIZE)))
    b_fused_p = jnp.pad(b_fused, ((0, 0), (0, OUT_PAD - OUTPUT_SIZE)))

    # Pad batch to a full sublane height, go time-major, flatten (T, BP) -> T*BP.
    x_p = jnp.pad(x.astype(jnp.float32), ((0, BP - B), (0, 0), (0, 0)))      # (BP, T, I)
    x_tbi = jnp.transpose(x_p, (1, 0, 2)).reshape(T * BP, I)                 # (T*BP, I)

    vmem = pl.BlockSpec(memory_space=pltpu.MemorySpace.VMEM)
    out_p = pl.pallas_call(
        lstm_mlp_kernel,
        out_shape=jax.ShapeDtypeStruct((BP, OUT_PAD), jnp.float32),
        in_specs=[vmem] * 6,
        out_specs=vmem,
        scratch_shapes=[pltpu.VMEM((T * BP, 4 * GATE_PAD), jnp.float32)],
    )(x_tbi, wih_p, whh_p, b_p, w_fused_p, b_fused_p)
    return out_p[:B, :OUTPUT_SIZE]


def reference_forward(x, params):
    """Pure-JAX reference mirroring torch.nn.LSTM + two Linear layers."""
    w_ih, w_hh, b_ih, b_hh, w_fc1, b_fc1, w_fc2, b_fc2 = params
    B = x.shape[0]
    H = HIDDEN_SIZE

    def cell(carry, x_t):
        h, c = carry
        gates = x_t @ w_ih.T + b_ih + h @ w_hh.T + b_hh
        i_g = jax.nn.sigmoid(gates[:, 0 * H:1 * H])
        f_g = jax.nn.sigmoid(gates[:, 1 * H:2 * H])
        g_g = jnp.tanh(gates[:, 2 * H:3 * H])
        o_g = jax.nn.sigmoid(gates[:, 3 * H:4 * H])
        c_new = f_g * c + i_g * g_g
        h_new = o_g * jnp.tanh(c_new)
        return (h_new, c_new), None

    h0 = jnp.zeros((B, H), jnp.float32)
    c0 = jnp.zeros((B, H), jnp.float32)
    (h_last, _), _ = lax.scan(cell, (h0, c0), jnp.transpose(x, (1, 0, 2)))
    inter = h_last @ w_fc1.T + b_fc1
    return inter @ w_fc2.T + b_fc2


if __name__ == "__main__":
    key = jax.random.PRNGKey(0)
    k_param, k_x = jax.random.split(key)

    batch, seq = 2, 8
    x = jax.random.normal(k_x, (batch, seq, INPUT_SIZE), dtype=jnp.float32)
    params = init_params(k_param)

    out = lstm_model_forward(x, params)
    out = jax.block_until_ready(out)

    ref = reference_forward(x, params)
    assert out.shape == (batch, OUTPUT_SIZE)
    assert jnp.allclose(out, ref, atol=2e-5, rtol=2e-5), (out, ref)

    print("KERNEL_OK")
</pallas_src>

<mosaic_0001>
module attributes {stable_mosaic.version = 11 : i64} {
  func.func @lstm_mlp_kernel(%arg0: memref<64x6xf32, #tpu.memory_space<vmem>>, %arg1: memref<6x512xf32, #tpu.memory_space<vmem>>, %arg2: memref<128x512xf32, #tpu.memory_space<vmem>>, %arg3: memref<1x512xf32, #tpu.memory_space<vmem>>, %arg4: memref<128x128xf32, #tpu.memory_space<vmem>>, %arg5: memref<1x128xf32, #tpu.memory_space<vmem>>, %arg6: memref<8x128xf32, #tpu.memory_space<vmem>>, %arg7: memref<64x512xf32, #tpu.memory_space<vmem>>) attributes {dimension_semantics = [], scalar_prefetch = 0 : i64, scratch_operands = 1 : i64, tpu.core_type = #tpu.core_type<tc>} {
    %c0 = arith.constant 0 : index
    %c0_0 = arith.constant 0 : index
    %0 = vector.load %arg0[%c0, %c0_0] : memref<64x6xf32, #tpu.memory_space<vmem>>, vector<64x6xf32>
    %c0_1 = arith.constant 0 : index
    %c0_2 = arith.constant 0 : index
    %1 = vector.load %arg1[%c0_1, %c0_2] : memref<6x512xf32, #tpu.memory_space<vmem>>, vector<6x512xf32>
    %cst = arith.constant dense<0.000000e+00> : vector<64x512xf32>
    %2 = tpu.matmul %0, %1, %cst {dimension_numbers = #tpu.dot_dimension_numbers<[1], [0], [0], [1], [0, 0, 1, 1], [], []>} : vector<64x6xf32>, vector<6x512xf32>, vector<64x512xf32> -> vector<64x512xf32>
    %c0_3 = arith.constant 0 : index
    %c0_4 = arith.constant 0 : index
    %3 = vector.load %arg3[%c0_3, %c0_4] : memref<1x512xf32, #tpu.memory_space<vmem>>, vector<1x512xf32>
    %4 = vector.broadcast %3 : vector<1x512xf32> to vector<64x512xf32>
    %5 = arith.addf %2, %4 : vector<64x512xf32>
    %c0_5 = arith.constant 0 : index
    %c0_6 = arith.constant 0 : index
    %6 = vector.load %arg7[%c0_5, %c0_6] : memref<64x512xf32, #tpu.memory_space<vmem>>, vector<64x512xf32>
    tpu.vector_store %arg7[%c0_5, %c0_6], %5 {strides = array<i32>} : memref<64x512xf32, #tpu.memory_space<vmem>>, vector<64x512xf32>,
    %cst_7 = arith.constant 0.000000e+00 : f32
    %7 = vector.broadcast %cst_7 : f32 to vector<8x128xf32>
    %cst_8 = arith.constant 0.000000e+00 : f32
    %8 = vector.broadcast %cst_8 : f32 to vector<8x128xf32>
    %c0_i32 = arith.constant 0 : i32
    %c8_i32 = arith.constant 8 : i32
    %9 = arith.muli %c0_i32, %c8_i32 : i32
    %10 = tpu.assume_multiple %9, 8 : i32
    %11 = arith.index_cast %10 : i32 to index
    %c0_9 = arith.constant 0 : index
    %12 = vector.load %arg7[%11, %c0_9] : memref<64x512xf32, #tpu.memory_space<vmem>>, vector<8x512xf32>
    %c0_10 = arith.constant 0 : index
    %c0_11 = arith.constant 0 : index
    %13 = vector.load %arg2[%c0_10, %c0_11] : memref<128x512xf32, #tpu.memory_space<vmem>>, vector<128x512xf32>
    %cst_12 = arith.constant dense<0.000000e+00> : vector<8x512xf32>
    %14 = tpu.matmul %7, %13, %cst_12 {dimension_numbers = #tpu.dot_dimension_numbers<[1], [0], [0], [1], [0, 0, 1, 1], [], []>} : vector<8x128xf32>, vector<128x512xf32>, vector<8x512xf32> -> vector<8x512xf32>
    %15 = arith.addf %12, %14 : vector<8x512xf32>
    %16 = vector.extract_strided_slice %15 {offsets = [0, 0], sizes = [8, 256], strides = [1, 1]} : vector<8x512xf32> to vector<8x256xf32>
    %17 = arith.negf %16 : vector<8x256xf32>
    %18 = math.exp %17 : vector<8x256xf32>
    %cst_13 = arith.constant 1.000000e+00 : f32
    %19 = vector.broadcast %cst_13 : f32 to vector<8x256xf32>
    %20 = arith.addf %19, %18 : vector<8x256xf32>
    %21 = arith.divf %19, %20 : vector<8x256xf32>
    %22 = vector.extract_strided_slice %15 {offsets = [0, 384], sizes = [8, 128], strides = [1, 1]} : vector<8x512xf32> to vector<8x128xf32>
    %23 = math.tanh %22 : vector<8x128xf32>
    %24 = vector.extract_strided_slice %21 {offsets = [0, 128], sizes = [8, 128], strides = [1, 1]} : vector<8x256xf32> to vector<8x128xf32>
    %25 = arith.mulf %24, %8 : vector<8x128xf32>
    %26 = vector.extract_strided_slice %21 {offsets = [0, 0], sizes = [8, 128], strides = [1, 1]} : vector<8x256xf32> to vector<8x128xf32>
    %27 = arith.mulf %26, %23 : vector<8x128xf32>
    %28 = arith.addf %25, %27 : vector<8x128xf32>
    %29 = vector.extract_strided_slice %15 {offsets = [0, 256], sizes = [8, 128], strides = [1, 1]} : vector<8x512xf32> to vector<8x128xf32>
    %30 = arith.negf %29 : vector<8x128xf32>
    %31 = math.exp %30 : vector<8x128xf32>
    %cst_14 = arith.constant 1.000000e+00 : f32
    %32 = vector.broadcast %cst_14 : f32 to vector<8x128xf32>
    %33 = arith.addf %32, %31 : vector<8x128xf32>
    %34 = arith.divf %32, %33 : vector<8x128xf32>
    %35 = math.tanh %28 : vector<8x128xf32>
    %36 = arith.mulf %34, %35 : vector<8x128xf32>
    %c1_i32 = arith.constant 1 : i32
    %c8_i32_15 = arith.constant 8 : i32
    %37 = arith.muli %c1_i32, %c8_i32_15 : i32
    %38 = tpu.assume_multiple %37, 8 : i32
    %39 = arith.index_cast %38 : i32 to index
    %c0_16 = arith.constant 0 : index
    %40 = vector.load %arg7[%39, %c0_16] : memref<64x512xf32, #tpu.memory_space<vmem>>, vector<8x512xf32>
    %c0_17 = arith.constant 0 : index
    %c0_18 = arith.constant 0 : index
    %41 = vector.load %arg2[%c0_17, %c0_18] : memref<128x512xf32, #tpu.memory_space<vmem>>, vector<128x512xf32>
    %cst_19 = arith.constant dense<0.000000e+00> : vector<8x512xf32>
    %42 = tpu.matmul %36, %41, %cst_19 {dimension_numbers = #tpu.dot_dimension_numbers<[1], [0], [0], [1], [0, 0, 1, 1], [], []>} : vector<8x128xf32>, vector<128x512xf32>, vector<8x512xf32> -> vector<8x512xf32>
    %43 = arith.addf %40, %42 : vector<8x512xf32>
    %44 = vector.extract_strided_slice %43 {offsets = [0, 0], sizes = [8, 256], strides = [1, 1]} : vector<8x512xf32> to vector<8x256xf32>
    %45 = arith.negf %44 : vector<8x256xf32>
    %46 = math.exp %45 : vector<8x256xf32>
    %cst_20 = arith.constant 1.000000e+00 : f32
    %47 = vector.broadcast %cst_20 : f32 to vector<8x256xf32>
    %48 = arith.addf %47, %46 : vector<8x256xf32>
    %49 = arith.divf %47, %48 : vector<8x256xf32>
    %50 = vector.extract_strided_slice %43 {offsets = [0, 384], sizes = [8, 128], strides = [1, 1]} : vector<8x512xf32> to vector<8x128xf32>
    %51 = math.tanh %50 : vector<8x128xf32>
    %52 = vector.extract_strided_slice %49 {offsets = [0, 128], sizes = [8, 128], strides = [1, 1]} : vector<8x256xf32> to vector<8x128xf32>
    %53 = arith.mulf %52, %28 : vector<8x128xf32>
    %54 = vector.extract_strided_slice %49 {offsets = [0, 0], sizes = [8, 128], strides = [1, 1]} : vector<8x256xf32> to vector<8x128xf32>
    %55 = arith.mulf %54, %51 : vector<8x128xf32>
    %56 = arith.addf %53, %55 : vector<8x128xf32>
    %57 = vector.extract_strided_slice %43 {offsets = [0, 256], sizes = [8, 128], strides = [1, 1]} : vector<8x512xf32> to vector<8x128xf32>
    %58 = arith.negf %57 : vector<8x128xf32>
    %59 = math.exp %58 : vector<8x128xf32>
    %cst_21 = arith.constant 1.000000e+00 : f32
    %60 = vector.broadcast %cst_21 : f32 to vector<8x128xf32>
    %61 = arith.addf %60, %59 : vector<8x128xf32>
    %62 = arith.divf %60, %61 : vector<8x128xf32>
    %63 = math.tanh %56 : vector<8x128xf32>
    %64 = arith.mulf %62, %63 : vector<8x128xf32>
    %c2_i32 = arith.constant 2 : i32
    %c8_i32_22 = arith.constant 8 : i32
    %65 = arith.muli %c2_i32, %c8_i32_22 : i32
    %66 = tpu.assume_multiple %65, 8 : i32
    %67 = arith.index_cast %66 : i32 to index
    %c0_23 = arith.constant 0 : index
    %68 = vector.load %arg7[%67, %c0_23] : memref<64x512xf32, #tpu.memory_space<vmem>>, vector<8x512xf32>
    %c0_24 = arith.constant 0 : index
    %c0_25 = arith.constant 0 : index
    %69 = vector.load %arg2[%c0_24, %c0_25] : memref<128x512xf32, #tpu.memory_space<vmem>>, vector<128x512xf32>
    %cst_26 = arith.constant dense<0.000000e+00> : vector<8x512xf32>
    %70 = tpu.matmul %64, %69, %cst_26 {dimension_numbers = #tpu.dot_dimension_numbers<[1], [0], [0], [1], [0, 0, 1, 1], [], []>} : vector<8x128xf32>, vector<128x512xf32>, vector<8x512xf32> -> vector<8x512xf32>
    %71 = arith.addf %68, %70 : vector<8x512xf32>
    %72 = vector.extract_strided_slice %71 {offsets = [0, 0], sizes = [8, 256], strides = [1, 1]} : vector<8x512xf32> to vector<8x256xf32>
    %73 = arith.negf %72 : vector<8x256xf32>
    %74 = math.exp %73 : vector<8x256xf32>
    %cst_27 = arith.constant 1.000000e+00 : f32
    %75 = vector.broadcast %cst_27 : f32 to vector<8x256xf32>
    %76 = arith.addf %75, %74 : vector<8x256xf32>
    %77 = arith.divf %75, %76 : vector<8x256xf32>
    %78 = vector.extract_strided_slice %71 {offsets = [0, 384], sizes = [8, 128], strides = [1, 1]} : vector<8x512xf32> to vector<8x128xf32>
    %79 = math.tanh %78 : vector<8x128xf32>
    %80 = vector.extract_strided_slice %77 {offsets = [0, 128], sizes = [8, 128], strides = [1, 1]} : vector<8x256xf32> to vector<8x128xf32>
    %81 = arith.mulf %80, %56 : vector<8x128xf32>
    %82 = vector.extract_strided_slice %77 {offsets = [0, 0], sizes = [8, 128], strides = [1, 1]} : vector<8x256xf32> to vector<8x128xf32>
    %83 = arith.mulf %82, %79 : vector<8x128xf32>
    %84 = arith.addf %81, %83 : vector<8x128xf32>
    %85 = vector.extract_strided_slice %71 {offsets = [0, 256], sizes = [8, 128], strides = [1, 1]} : vector<8x512xf32> to vector<8x128xf32>
    %86 = arith.negf %85 : vector<8x128xf32>
    %87 = math.exp %86 : vector<8x128xf32>
    %cst_28 = arith.constant 1.000000e+00 : f32
    %88 = vector.broadcast %cst_28 : f32 to vector<8x128xf32>
    %89 = arith.addf %88, %87 : vector<8x128xf32>
    %90 = arith.divf %88, %89 : vector<8x128xf32>
    %91 = math.tanh %84 : vector<8x128xf32>
    %92 = arith.mulf %90, %91 : vector<8x128xf32>
    %c3_i32 = arith.constant 3 : i32
    %c8_i32_29 = arith.constant 8 : i32
    %93 = arith.muli %c3_i32, %c8_i32_29 : i32
    %94 = tpu.assume_multiple %93, 8 : i32
    %95 = arith.index_cast %94 : i32 to index
    %c0_30 = arith.constant 0 : index
    %96 = vector.load %arg7[%95, %c0_30] : memref<64x512xf32, #tpu.memory_space<vmem>>, vector<8x512xf32>
    %c0_31 = arith.constant 0 : index
    %c0_32 = arith.constant 0 : index
    %97 = vector.load %arg2[%c0_31, %c0_32] : memref<128x512xf32, #tpu.memory_space<vmem>>, vector<128x512xf32>
    %cst_33 = arith.constant dense<0.000000e+00> : vector<8x512xf32>
    %98 = tpu.matmul %92, %97, %cst_33 {dimension_numbers = #tpu.dot_dimension_numbers<[1], [0], [0], [1], [0, 0, 1, 1], [], []>} : vector<8x128xf32>, vector<128x512xf32>, vector<8x512xf32> -> vector<8x512xf32>
    %99 = arith.addf %96, %98 : vector<8x512xf32>
    %100 = vector.extract_strided_slice %99 {offsets = [0, 0], sizes = [8, 256], strides = [1, 1]} : vector<8x512xf32> to vector<8x256xf32>
    %101 = arith.negf %100 : vector<8x256xf32>
    %102 = math.exp %101 : vector<8x256xf32>
    %cst_34 = arith.constant 1.000000e+00 : f32
    %103 = vector.broadcast %cst_34 : f32 to vector<8x256xf32>
    %104 = arith.addf %103, %102 : vector<8x256xf32>
    %105 = arith.divf %103, %104 : vector<8x256xf32>
    %106 = vector.extract_strided_slice %99 {offsets = [0, 384], sizes = [8, 128], strides = [1, 1]} : vector<8x512xf32> to vector<8x128xf32>
    %107 = math.tanh %106 : vector<8x128xf32>
    %108 = vector.extract_strided_slice %105 {offsets = [0, 128], sizes = [8, 128], strides = [1, 1]} : vector<8x256xf32> to vector<8x128xf32>
    %109 = arith.mulf %108, %84 : vector<8x128xf32>
    %110 = vector.extract_strided_slice %105 {offsets = [0, 0], sizes = [8, 128], strides = [1, 1]} : vector<8x256xf32> to vector<8x128xf32>
    %111 = arith.mulf %110, %107 : vector<8x128xf32>
    %112 = arith.addf %109, %111 : vector<8x128xf32>
    %113 = vector.extract_strided_slice %99 {offsets = [0, 256], sizes = [8, 128], strides = [1, 1]} : vector<8x512xf32> to vector<8x128xf32>
    %114 = arith.negf %113 : vector<8x128xf32>
    %115 = math.exp %114 : vector<8x128xf32>
    %cst_35 = arith.constant 1.000000e+00 : f32
    %116 = vector.broadcast %cst_35 : f32 to vector<8x128xf32>
    %117 = arith.addf %116, %115 : vector<8x128xf32>
    %118 = arith.divf %116, %117 : vector<8x128xf32>
    %119 = math.tanh %112 : vector<8x128xf32>
    %120 = arith.mulf %118, %119 : vector<8x128xf32>
    %c4_i32 = arith.constant 4 : i32
    %c8_i32_36 = arith.constant 8 : i32
    %121 = arith.muli %c4_i32, %c8_i32_36 : i32
    %122 = tpu.assume_multiple %121, 8 : i32
    %123 = arith.index_cast %122 : i32 to index
    %c0_37 = arith.constant 0 : index
    %124 = vector.load %arg7[%123, %c0_37] : memref<64x512xf32, #tpu.memory_space<vmem>>, vector<8x512xf32>
    %c0_38 = arith.constant 0 : index
    %c0_39 = arith.constant 0 : index
    %125 = vector.load %arg2[%c0_38, %c0_39] : memref<128x512xf32, #tpu.memory_space<vmem>>, vector<128x512xf32>
    %cst_40 = arith.constant dense<0.000000e+00> : vector<8x512xf32>
    %126 = tpu.matmul %120, %125, %cst_40 {dimension_numbers = #tpu.dot_dimension_numbers<[1], [0], [0], [1], [0, 0, 1, 1], [], []>} : vector<8x128xf32>, vector<128x512xf32>, vector<8x512xf32> -> vector<8x512xf32>
    %127 = arith.addf %124, %126 : vector<8x512xf32>
    %128 = vector.extract_strided_slice %127 {offsets = [0, 0], sizes = [8, 256], strides = [1, 1]} : vector<8x512xf32> to vector<8x256xf32>
    %129 = arith.negf %128 : vector<8x256xf32>
    %130 = math.exp %129 : vector<8x256xf32>
    %cst_41 = arith.constant 1.000000e+00 : f32
    %131 = vector.broadcast %cst_41 : f32 to vector<8x256xf32>
    %132 = arith.addf %131, %130 : vector<8x256xf32>
    %133 = arith.divf %131, %132 : vector<8x256xf32>
    %134 = vector.extract_strided_slice %127 {offsets = [0, 384], sizes = [8, 128], strides = [1, 1]} : vector<8x512xf32> to vector<8x128xf32>
    %135 = math.tanh %134 : vector<8x128xf32>
    %136 = vector.extract_strided_slice %133 {offsets = [0, 128], sizes = [8, 128], strides = [1, 1]} : vector<8x256xf32> to vector<8x128xf32>
    %137 = arith.mulf %136, %112 : vector<8x128xf32>
    %138 = vector.extract_strided_slice %133 {offsets = [0, 0], sizes = [8, 128], strides = [1, 1]} : vector<8x256xf32> to vector<8x128xf32>
    %139 = arith.mulf %138, %135 : vector<8x128xf32>
    %140 = arith.addf %137, %139 : vector<8x128xf32>
    %141 = vector.extract_strided_slice %127 {offsets = [0, 256], sizes = [8, 128], strides = [1, 1]} : vector<8x512xf32> to vector<8x128xf32>
    %142 = arith.negf %141 : vector<8x128xf32>
    %143 = math.exp %142 : vector<8x128xf32>
    %cst_42 = arith.constant 1.000000e+00 : f32
    %144 = vector.broadcast %cst_42 : f32 to vector<8x128xf32>
    %145 = arith.addf %144, %143 : vector<8x128xf32>
    %146 = arith.divf %144, %145 : vector<8x128xf32>
    %147 = math.tanh %140 : vector<8x128xf32>
    %148 = arith.mulf %146, %147 : vector<8x128xf32>
    %c5_i32 = arith.constant 5 : i32
    %c8_i32_43 = arith.constant 8 : i32
    %149 = arith.muli %c5_i32, %c8_i32_43 : i32
    %150 = tpu.assume_multiple %149, 8 : i32
    %151 = arith.index_cast %150 : i32 to index
    %c0_44 = arith.constant 0 : index
    %152 = vector.load %arg7[%151, %c0_44] : memref<64x512xf32, #tpu.memory_space<vmem>>, vector<8x512xf32>
    %c0_45 = arith.constant 0 : index
    %c0_46 = arith.constant 0 : index
    %153 = vector.load %arg2[%c0_45, %c0_46] : memref<128x512xf32, #tpu.memory_space<vmem>>, vector<128x512xf32>
    %cst_47 = arith.constant dense<0.000000e+00> : vector<8x512xf32>
    %154 = tpu.matmul %148, %153, %cst_47 {dimension_numbers = #tpu.dot_dimension_numbers<[1], [0], [0], [1], [0, 0, 1, 1], [], []>} : vector<8x128xf32>, vector<128x512xf32>, vector<8x512xf32> -> vector<8x512xf32>
    %155 = arith.addf %152, %154 : vector<8x512xf32>
    %156 = vector.extract_strided_slice %155 {offsets = [0, 0], sizes = [8, 256], strides = [1, 1]} : vector<8x512xf32> to vector<8x256xf32>
    %157 = arith.negf %156 : vector<8x256xf32>
    %158 = math.exp %157 : vector<8x256xf32>
    %cst_48 = arith.constant 1.000000e+00 : f32
    %159 = vector.broadcast %cst_48 : f32 to vector<8x256xf32>
    %160 = arith.addf %159, %158 : vector<8x256xf32>
    %161 = arith.divf %159, %160 : vector<8x256xf32>
    %162 = vector.extract_strided_slice %155 {offsets = [0, 384], sizes = [8, 128], strides = [1, 1]} : vector<8x512xf32> to vector<8x128xf32>
    %163 = math.tanh %162 : vector<8x128xf32>
    %164 = vector.extract_strided_slice %161 {offsets = [0, 128], sizes = [8, 128], strides = [1, 1]} : vector<8x256xf32> to vector<8x128xf32>
    %165 = arith.mulf %164, %140 : vector<8x128xf32>
    %166 = vector.extract_strided_slice %161 {offsets = [0, 0], sizes = [8, 128], strides = [1, 1]} : vector<8x256xf32> to vector<8x128xf32>
    %167 = arith.mulf %166, %163 : vector<8x128xf32>
    %168 = arith.addf %165, %167 : vector<8x128xf32>
    %169 = vector.extract_strided_slice %155 {offsets = [0, 256], sizes = [8, 128], strides = [1, 1]} : vector<8x512xf32> to vector<8x128xf32>
    %170 = arith.negf %169 : vector<8x128xf32>
    %171 = math.exp %170 : vector<8x128xf32>
    %cst_49 = arith.constant 1.000000e+00 : f32
    %172 = vector.broadcast %cst_49 : f32 to vector<8x128xf32>
    %173 = arith.addf %172, %171 : vector<8x128xf32>
    %174 = arith.divf %172, %173 : vector<8x128xf32>
    %175 = math.tanh %168 : vector<8x128xf32>
    %176 = arith.mulf %174, %175 : vector<8x128xf32>
    %c6_i32 = arith.constant 6 : i32
    %c8_i32_50 = arith.constant 8 : i32
    %177 = arith.muli %c6_i32, %c8_i32_50 : i32
    %178 = tpu.assume_multiple %177, 8 : i32
    %179 = arith.index_cast %178 : i32 to index
    %c0_51 = arith.constant 0 : index
    %180 = vector.load %arg7[%179, %c0_51] : memref<64x512xf32, #tpu.memory_space<vmem>>, vector<8x512xf32>
    %c0_52 = arith.constant 0 : index
    %c0_53 = arith.constant 0 : index
    %181 = vector.load %arg2[%c0_52, %c0_53] : memref<128x512xf32, #tpu.memory_space<vmem>>, vector<128x512xf32>
    %cst_54 = arith.constant dense<0.000000e+00> : vector<8x512xf32>
    %182 = tpu.matmul %176, %181, %cst_54 {dimension_numbers = #tpu.dot_dimension_numbers<[1], [0], [0], [1], [0, 0, 1, 1], [], []>} : vector<8x128xf32>, vector<128x512xf32>, vector<8x512xf32> -> vector<8x512xf32>
    %183 = arith.addf %180, %182 : vector<8x512xf32>
    %184 = vector.extract_strided_slice %183 {offsets = [0, 0], sizes = [8, 256], strides = [1, 1]} : vector<8x512xf32> to vector<8x256xf32>
    %185 = arith.negf %184 : vector<8x256xf32>
    %186 = math.exp %185 : vector<8x256xf32>
    %cst_55 = arith.constant 1.000000e+00 : f32
    %187 = vector.broadcast %cst_55 : f32 to vector<8x256xf32>
    %188 = arith.addf %187, %186 : vector<8x256xf32>
    %189 = arith.divf %187, %188 : vector<8x256xf32>
    %190 = vector.extract_strided_slice %183 {offsets = [0, 384], sizes = [8, 128], strides = [1, 1]} : vector<8x512xf32> to vector<8x128xf32>
    %191 = math.tanh %190 : vector<8x128xf32>
    %192 = vector.extract_strided_slice %189 {offsets = [0, 128], sizes = [8, 128], strides = [1, 1]} : vector<8x256xf32> to vector<8x128xf32>
    %193 = arith.mulf %192, %168 : vector<8x128xf32>
    %194 = vector.extract_strided_slice %189 {offsets = [0, 0], sizes = [8, 128], strides = [1, 1]} : vector<8x256xf32> to vector<8x128xf32>
    %195 = arith.mulf %194, %191 : vector<8x128xf32>
    %196 = arith.addf %193, %195 : vector<8x128xf32>
    %197 = vector.extract_strided_slice %183 {offsets = [0, 256], sizes = [8, 128], strides = [1, 1]} : vector<8x512xf32> to vector<8x128xf32>
    %198 = arith.negf %197 : vector<8x128xf32>
    %199 = math.exp %198 : vector<8x128xf32>
    %cst_56 = arith.constant 1.000000e+00 : f32
    %200 = vector.broadcast %cst_56 : f32 to vector<8x128xf32>
    %201 = arith.addf %200, %199 : vector<8x128xf32>
    %202 = arith.divf %200, %201 : vector<8x128xf32>
    %203 = math.tanh %196 : vector<8x128xf32>
    %204 = arith.mulf %202, %203 : vector<8x128xf32>
    %c7_i32 = arith.constant 7 : i32
    %c8_i32_57 = arith.constant 8 : i32
    %205 = arith.muli %c7_i32, %c8_i32_57 : i32
    %206 = tpu.assume_multiple %205, 8 : i32
    %207 = arith.index_cast %206 : i32 to index
    %c0_58 = arith.constant 0 : index
    %208 = vector.load %arg7[%207, %c0_58] : memref<64x512xf32, #tpu.memory_space<vmem>>, vector<8x512xf32>
    %c0_59 = arith.constant 0 : index
    %c0_60 = arith.constant 0 : index
    %209 = vector.load %arg2[%c0_59, %c0_60] : memref<128x512xf32, #tpu.memory_space<vmem>>, vector<128x512xf32>
    %cst_61 = arith.constant dense<0.000000e+00> : vector<8x512xf32>
    %210 = tpu.matmul %204, %209, %cst_61 {dimension_numbers = #tpu.dot_dimension_numbers<[1], [0], [0], [1], [0, 0, 1, 1], [], []>} : vector<8x128xf32>, vector<128x512xf32>, vector<8x512xf32> -> vector<8x512xf32>
    %211 = arith.addf %208, %210 : vector<8x512xf32>
    %212 = vector.extract_strided_slice %211 {offsets = [0, 0], sizes = [8, 256], strides = [1, 1]} : vector<8x512xf32> to vector<8x256xf32>
    %213 = arith.negf %212 : vector<8x256xf32>
    %214 = math.exp %213 : vector<8x256xf32>
    %cst_62 = arith.constant 1.000000e+00 : f32
    %215 = vector.broadcast %cst_62 : f32 to vector<8x256xf32>
    %216 = arith.addf %215, %214 : vector<8x256xf32>
    %217 = arith.divf %215, %216 : vector<8x256xf32>
    %218 = vector.extract_strided_slice %211 {offsets = [0, 384], sizes = [8, 128], strides = [1, 1]} : vector<8x512xf32> to vector<8x128xf32>
    %219 = math.tanh %218 : vector<8x128xf32>
    %220 = vector.extract_strided_slice %217 {offsets = [0, 128], sizes = [8, 128], strides = [1, 1]} : vector<8x256xf32> to vector<8x128xf32>
    %221 = arith.mulf %220, %196 : vector<8x128xf32>
    %222 = vector.extract_strided_slice %217 {offsets = [0, 0], sizes = [8, 128], strides = [1, 1]} : vector<8x256xf32> to vector<8x128xf32>
    %223 = arith.mulf %222, %219 : vector<8x128xf32>
    %224 = arith.addf %221, %223 : vector<8x128xf32>
    %225 = vector.extract_strided_slice %211 {offsets = [0, 256], sizes = [8, 128], strides = [1, 1]} : vector<8x512xf32> to vector<8x128xf32>
    %226 = arith.negf %225 : vector<8x128xf32>
    %227 = math.exp %226 : vector<8x128xf32>
    %cst_63 = arith.constant 1.000000e+00 : f32
    %228 = vector.broadcast %cst_63 : f32 to vector<8x128xf32>
    %229 = arith.addf %228, %227 : vector<8x128xf32>
    %230 = arith.divf %228, %229 : vector<8x128xf32>
    %231 = math.tanh %224 : vector<8x128xf32>
    %232 = arith.mulf %230, %231 : vector<8x128xf32>
    %c8_i32_64 = arith.constant 8 : i32
    %c0_65 = arith.constant 0 : index
    %c0_66 = arith.constant 0 : index
    %233 = vector.load %arg4[%c0_65, %c0_66] : memref<128x128xf32, #tpu.memory_space<vmem>>, vector<128x128xf32>
    %cst_67 = arith.constant dense<0.000000e+00> : vector<8x128xf32>
    %234 = tpu.matmul %232, %233, %cst_67 {dimension_numbers = #tpu.dot_dimension_numbers<[1], [0], [0], [1], [0, 0, 1, 1], [], []>} : vector<8x128xf32>, vector<128x128xf32>, vector<8x128xf32> -> vector<8x128xf32>
    %c0_68 = arith.constant 0 : index
    %c0_69 = arith.constant 0 : index
    %235 = vector.load %arg5[%c0_68, %c0_69] : memref<1x128xf32, #tpu.memory_space<vmem>>, vector<1x128xf32>
    %236 = vector.broadcast %235 : vector<1x128xf32> to vector<8x128xf32>
    %237 = arith.addf %234, %236 : vector<8x128xf32>
    %c0_70 = arith.constant 0 : index
    %c0_71 = arith.constant 0 : index
    %238 = vector.load %arg6[%c0_70, %c0_71] : memref<8x128xf32, #tpu.memory_space<vmem>>, vector<8x128xf32>
    tpu.vector_store %arg6[%c0_70, %c0_71], %237 {strides = array<i32>} : memref<8x128xf32, #tpu.memory_space<vmem>>, vector<8x128xf32>,
    return
  }
}

</mosaic_0001>

<llo_original>
// kernel: lstm_model_forward.1
$region0: #{lstm_model_forward.1}
  #allocation0 [shape = 'u32[]', space=smem, size = 0x4, offset = 0x4, fixed_abs, tag = 'smem constant byte address 0x4 - core index']
  #allocation1 [shape = 'u32[144,128]{1,0:T(1,128)}', space=vmem, size = 0x12000, scoped, tag = 'internal scratch']
  #allocation2 [shape = 'f32[64,512]{1,0:T(8,128)}', space=vmem, size = 0x20000, scoped, tag = 'scratch operand']
  %s0 = inlined_call_operand.vmem [shape: f32[64,6], index: 0, kind: input, shape index: {}]
  %s1 = inlined_call_operand.vmem [shape: f32[6,512], index: 1, kind: input, shape index: {}]
  %s2 = inlined_call_operand.vmem [shape: f32[128,512], index: 2, kind: input, shape index: {}]
  %s3 = inlined_call_operand.vmem [shape: f32[1,512], index: 3, kind: input, shape index: {}]
  %s4 = inlined_call_operand.vmem [shape: f32[128,128], index: 4, kind: input, shape index: {}]
  %s5 = inlined_call_operand.vmem [shape: f32[1,128], index: 5, kind: input, shape index: {}]
  %s6 = inlined_call_operand.vmem [shape: f32[8,128], index: 6, kind: output, shape index: {}]
  %s7 = sld [smem:[#allocation0]]
  $region34: #{lstm_model_forward.1} parent=0
    _
  %s9 = ssub.s32 1, %s7
  %s10 = scalar_select 0, %s9, %s7
  // Predicated region
  $region2: #{lstm_model_forward.1} parent=0 // pred_check
    _
  $region3: #{lstm_model_forward.1} parent=0 // pred_check_branch
    %12 = sbr.rel (0) target = $region5
  $region4: #{lstm_model_forward.1} parent=0 // pred_region
    _
  $region5: #{lstm_model_forward.1} parent=0 // pred_fallthru
    _
  // Predicated region
  $region6: #{lstm_model_forward.1} parent=0 // pred_check
    _
  $region7: #{lstm_model_forward.1} parent=0 // pred_check_branch
    %14 = sbr.rel (0) target = $region9
  $region8: #{lstm_model_forward.1} parent=0 // pred_region
    _
  $region9: #{lstm_model_forward.1} parent=0 // pred_fallthru
    _
  // Predicated region
  $region10: #{lstm_model_forward.1} parent=0 // pred_check
    _
  $region11: #{lstm_model_forward.1} parent=0 // pred_check_branch
    %16 = sbr.rel (0) target = $region13
  $region12: #{lstm_model_forward.1} parent=0 // pred_region
    _
  $region13: #{lstm_model_forward.1} parent=0 // pred_fallthru
    _
  // Predicated region
  $region14: #{lstm_model_forward.1} parent=0 // pred_check
    _
  $region15: #{lstm_model_forward.1} parent=0 // pred_check_branch
    %18 = sbr.rel (0) target = $region17
  $region16: #{lstm_model_forward.1} parent=0 // pred_region
    _
  $region17: #{lstm_model_forward.1} parent=0 // pred_fallthru
    _
  // Predicated region
  $region18: #{lstm_model_forward.1} parent=0 // pred_check
    _
  $region19: #{lstm_model_forward.1} parent=0 // pred_check_branch
    %20 = sbr.rel (0) target = $region21
  $region20: #{lstm_model_forward.1} parent=0 // pred_region
    _
  $region21: #{lstm_model_forward.1} parent=0 // pred_fallthru
    _
  // Predicated region
  $region22: #{lstm_model_forward.1} parent=0 // pred_check
    _
  $region23: #{lstm_model_forward.1} parent=0 // pred_check_branch
    %22 = sbr.rel (0) target = $region25
  $region24: #{lstm_model_forward.1} parent=0 // pred_region
    _
  $region25: #{lstm_model_forward.1} parent=0 // pred_fallthru
    _
  %v23 = vld [vmem:[%s0] sm:$0xff]
  %v24 = vld [vmem:[%s0 + $0x8] sm:$0xff]
  %v25 = vld [vmem:[%s0 + $0x10] sm:$0xff]
  %v26 = vld [vmem:[%s0 + $0x18] sm:$0xff]
  %v27 = vld [vmem:[%s0 + $0x20] sm:$0xff]
  %v28 = vld [vmem:[%s0 + $0x28] sm:$0xff]
  %v29 = vld [vmem:[%s0 + $0x30] sm:$0xff]
  %v30 = vld [vmem:[%s0 + $0x38] sm:$0xff]
  %v31 = vld [vmem:[%s1] sm:$0x3f]
  %v32 = vld [vmem:[%s1 + $0x8] sm:$0x3f]
  %v33 = vld [vmem:[%s1 + $0x10] sm:$0x3f]
  %v34 = vld [vmem:[%s1 + $0x18] sm:$0x3f]
  %v35 = vld [vmem:[%s3] sm:$0xf]
  %v37 = vlaneseq
  %v38 = vshrl.u32 %v37, 7
  %v39 = vsub.s32 0, %v38
  %v40 = vrot.slane %v35, %v39
  %v41 = vlaneseq
  %v42 = vshrl.u32 %v41, 7
  %v43 = vsub.s32 1, %v42
  %v44 = vrot.slane %v35, %v43
  %v45 = vlaneseq
  %v46 = vshrl.u32 %v45, 7
  %v47 = vsub.s32 2, %v46
  %v48 = vrot.slane %v35, %v47
  %v49 = vlaneseq
  %v50 = vshrl.u32 %v49, 7
  %v51 = vsub.s32 3, %v50
  %v52 = vrot.slane %v35, %v51
  %vm57 = vcmask 48128
  %v59 = vsel %vm57, %v23, 0
  %v62 = vsel %vm57, %v24, 0
  %v65 = vsel %vm57, %v25, 0
  %v68 = vsel %vm57, %v26, 0
  %v71 = vsel %vm57, %v27, 0
  %v74 = vsel %vm57, %v28, 0
  %v77 = vsel %vm57, %v29, 0
  %v80 = vsel %vm57, %v30, 0
  %vm82 = vcmask 1045504
  %v84 = vsel %vm82, %v31, 0
  %v87 = vsel %vm82, %v32, 0
  %v90 = vsel %vm82, %v33, 0
  %v93 = vsel %vm82, %v34, 0
  %95 = vmatprep.subr.mxu0 %v87
  %96 = vmatpush1.msra.mxu0 %v84
  %97 = vmatprep.subr.mxu0 0.0
  %98 = vmatpush1.msra.mxu0 0.0
  %99 = vmatprep.subr.mxu0 0.0
  %100 = vmatpush1.msra.mxu0 0.0
  %101 = vmatprep.subr.mxu0 0.0
  %102 = vmatpush1.msra.mxu0 0.0
  %103 = vmatprep.subr.mxu0 0.0
  %104 = vmatpush1.msra.mxu0 0.0
  %105 = vmatprep.subr.mxu0 0.0
  %106 = vmatpush1.msra.mxu0 0.0
  %107 = vmatprep.subr.mxu0 0.0
  %108 = vmatpush1.msra.mxu0 0.0
  %109 = vmatprep.subr.mxu0 0.0
  %110 = vmatpush1.msra.mxu0 0.0
  %111 = vmatprep.subr.mxu0 0.0
  %112 = vmatpush1.msra.mxu0 0.0
  %113 = vmatprep.subr.mxu0 0.0
  %114 = vmatpush1.msra.mxu0 0.0
  %115 = vmatprep.subr.mxu0 0.0
  %116 = vmatpush1.msra.mxu0 0.0
  %117 = vmatprep.subr.mxu0 0.0
  %118 = vmatpush1.msra.mxu0 0.0
  %119 = vmatprep.subr.mxu0 0.0
  %120 = vmatpush1.msra.mxu0 0.0
  %121 = vmatprep.subr.mxu0 0.0
  %122 = vmatpush1.msra.mxu0 0.0
  %123 = vmatprep.subr.mxu0 0.0
  %124 = vmatpush1.msra.mxu0 0.0
  %125 = vmatprep.subr.mxu0 0.0
  %126 = vmatpush1.msra.mxu0 0.0
  %127 = vmatprep.subr.mxu0 0.0
  %128 = vmatpush1.msra.mxu0 0.0
  %129 = vmatprep.subr.mxu0 0.0
  %130 = vmatpush1.msra.mxu0 0.0
  %131 = vmatprep.subr.mxu0 0.0
  %132 = vmatpush1.msra.mxu0 0.0
  %133 = vmatprep.subr.mxu0 0.0
  %134 = vmatpush1.msra.mxu0 0.0
  %135 = vmatprep.subr.mxu0 0.0
  %136 = vmatpush1.msra.mxu0 0.0
  %137 = vmatprep.subr.mxu0 0.0
  %138 = vmatpush1.msra.mxu0 0.0
  %139 = vmatprep.subr.mxu0 0.0
  %140 = vmatpush1.msra.mxu0 0.0
  %141 = vmatprep.subr.mxu0 0.0
  %142 = vmatpush1.msra.mxu0 0.0
  %143 = vmatprep.subr.mxu0 0.0
  %144 = vmatpush1.msra.mxu0 0.0
  %145 = vmatprep.subr.mxu0 0.0
  %146 = vmatpush1.msra.mxu0 0.0
  %147 = vmatprep.subr.mxu0 0.0
  %148 = vmatpush1.msra.mxu0 0.0
  %149 = vmatprep.subr.mxu0 0.0
  %150 = vmatpush1.msra.mxu0 0.0
  %151 = vmatprep.subr.mxu0 0.0
  %152 = vmatpush1.msra.mxu0 0.0
  %153 = vmatprep.subr.mxu0 0.0
  %154 = vmatpush1.msra.mxu0 0.0
  %155 = vmatprep.subr.mxu0 0.0
  %156 = vmatpush1.msra.mxu0 0.0
  %157 = vmatprep.subr.mxu0 0.0
  %158 = vmatpush1.msra.mxu0 0.0
  %159 = vmatprep.mubr.f32.mxu0 0.0
  %160 = vmatmul.mubr.f32.gmra.mrb[0].mxu0 %v59
  %v161 = vpop.f32.mrb[0].mxu0
  %v162 = vadd.f32 %v40, %v161
  %v163 = vpop.f32.mrb[0].mxu0
  %v164 = vadd.f32 %v44, %v163
  %165 = vmatprep.mubr.f32.mxu0 0.0
  %166 = vmatmul.mubr.f32.gmra.mrb[0].mxu0 %v62
  %v167 = vpop.f32.mrb[0].mxu0
  %v168 = vadd.f32 %v40, %v167
  %v169 = vpop.f32.mrb[0].mxu0
  %v170 = vadd.f32 %v44, %v169
  %171 = vmatprep.mubr.f32.mxu0 0.0
  %172 = vmatmul.mubr.f32.gmra.mrb[0].mxu0 %v65
  %v173 = vpop.f32.mrb[0].mxu0
  %v174 = vadd.f32 %v40, %v173
  %v175 = vpop.f32.mrb[0].mxu0
  %v176 = vadd.f32 %v44, %v175
  %177 = vmatprep.mubr.f32.mxu0 0.0
  %178 = vmatmul.mubr.f32.gmra.mrb[0].mxu0 %v68
  %v179 = vpop.f32.mrb[0].mxu0
  %v180 = vadd.f32 %v40, %v179
  %v181 = vpop.f32.mrb[0].mxu0
  %v182 = vadd.f32 %v44, %v181
  %183 = vmatprep.mubr.f32.mxu0 0.0
  %184 = vmatmul.mubr.f32.gmra.mrb[0].mxu0 %v71
  %v185 = vpop.f32.mrb[0].mxu0
  %v186 = vadd.f32 %v40, %v185
  %v187 = vpop.f32.mrb[0].mxu0
  %v188 = vadd.f32 %v44, %v187
  %189 = vmatprep.mubr.f32.mxu0 0.0
  %190 = vmatmul.mubr.f32.gmra.mrb[0].mxu0 %v74
  %v191 = vpop.f32.mrb[0].mxu0
  %v192 = vadd.f32 %v40, %v191
  %v193 = vpop.f32.mrb[0].mxu0
  %v194 = vadd.f32 %v44, %v193
  %195 = vmatprep.mubr.f32.mxu0 0.0
  %196 = vmatmul.mubr.f32.gmra.mrb[0].mxu0 %v77
  %v197 = vpop.f32.mrb[0].mxu0
  %v198 = vadd.f32 %v40, %v197
  %v199 = vpop.f32.mrb[0].mxu0
  %v200 = vadd.f32 %v44, %v199
  %201 = vmatprep.mubr.f32.mxu0 0.0
  %202 = vmatmul.mubr.f32.gmra.mrb[0].mxu0 %v80
  %v203 = vpop.f32.mrb[0].mxu0
  %v204 = vadd.f32 %v40, %v203
  %v205 = vpop.f32.mrb[0].mxu0
  %v206 = vadd.f32 %v44, %v205
  %207 = vdwg.mxu0
  %208 = vmatprep.subr.mxu0 %v93
  %209 = vmatpush1.msra.mxu0 %v90
  %210 = vmatprep.subr.mxu0 0.0
  %211 = vmatpush1.msra.mxu0 0.0
  %212 = vmatprep.subr.mxu0 0.0
  %213 = vmatpush1.msra.mxu0 0.0
  %214 = vmatprep.subr.mxu0 0.0
  %215 = vmatpush1.msra.mxu0 0.0
  %216 = vmatprep.subr.mxu0 0.0
  %217 = vmatpush1.msra.mxu0 0.0
  %218 = vmatprep.subr.mxu0 0.0
  %219 = vmatpush1.msra.mxu0 0.0
  %220 = vmatprep.subr.mxu0 0.0
  %221 = vmatpush1.msra.mxu0 0.0
  %222 = vmatprep.subr.mxu0 0.0
  %223 = vmatpush1.msra.mxu0 0.0
  %224 = vmatprep.subr.mxu0 0.0
  %225 = vmatpush1.msra.mxu0 0.0
  %226 = vmatprep.subr.mxu0 0.0
  %227 = vmatpush1.msra.mxu0 0.0
  %228 = vmatprep.subr.mxu0 0.0
  %229 = vmatpush1.msra.mxu0 0.0
  %230 = vmatprep.subr.mxu0 0.0
  %231 = vmatpush1.msra.mxu0 0.0
  %232 = vmatprep.subr.mxu0 0.0
  %233 = vmatpush1.msra.mxu0 0.0
  %234 = vmatprep.subr.mxu0 0.0
  %235 = vmatpush1.msra.mxu0 0.0
  %236 = vmatprep.subr.mxu0 0.0
  %237 = vmatpush1.msra.mxu0 0.0
  %238 = vmatprep.subr.mxu0 0.0
  %239 = vmatpush1.msra.mxu0 0.0
  %240 = vmatprep.subr.mxu0 0.0
  %241 = vmatpush1.msra.mxu0 0.0
  %242 = vmatprep.subr.mxu0 0.0
  %243 = vmatpush1.msra.mxu0 0.0
  %244 = vmatprep.subr.mxu0 0.0
  %245 = vmatpush1.msra.mxu0 0.0
  %246 = vmatprep.subr.mxu0 0.0
  %247 = vmatpush1.msra.mxu0 0.0
  %248 = vmatprep.subr.mxu0 0.0
  %249 = vmatpush1.msra.mxu0 0.0
  %250 = vmatprep.subr.mxu0 0.0
  %251 = vmatpush1.msra.mxu0 0.0
  %252 = vmatprep.subr.mxu0 0.0
  %253 = vmatpush1.msra.mxu0 0.0
  %254 = vmatprep.subr.mxu0 0.0
  %255 = vmatpush1.msra.mxu0 0.0
  %256 = vmatprep.subr.mxu0 0.0
  %257 = vmatpush1.msra.mxu0 0.0
  %258 = vmatprep.subr.mxu0 0.0
  %259 = vmatpush1.msra.mxu0 0.0
  %260 = vmatprep.subr.mxu0 0.0
  %261 = vmatpush1.msra.mxu0 0.0
  %262 = vmatprep.subr.mxu0 0.0
  %263 = vmatpush1.msra.mxu0 0.0
  %264 = vmatprep.subr.mxu0 0.0
  %265 = vmatpush1.msra.mxu0 0.0
  %266 = vmatprep.subr.mxu0 0.0
  %267 = vmatpush1.msra.mxu0 0.0
  %268 = vmatprep.subr.mxu0 0.0
  %269 = vmatpush1.msra.mxu0 0.0
  %270 = vmatprep.subr.mxu0 0.0
  %271 = vmatpush1.msra.mxu0 0.0
  %272 = vmatprep.mubr.f32.mxu0 0.0
  %273 = vmatmul.mubr.f32.gmra.mrb[0].mxu0 %v59
  %v274 = vpop.f32.mrb[0].mxu0
  %v275 = vadd.f32 %v48, %v274
  %v276 = vpop.f32.mrb[0].mxu0
  %v277 = vadd.f32 %v52, %v276
  %278 = vmatprep.mubr.f32.mxu0 0.0
  %279 = vmatmul.mubr.f32.gmra.mrb[0].mxu0 %v62
  %v280 = vpop.f32.mrb[0].mxu0
  %v281 = vadd.f32 %v48, %v280
  %v282 = vpop.f32.mrb[0].mxu0
  %v283 = vadd.f32 %v52, %v282
  %284 = vmatprep.mubr.f32.mxu0 0.0
  %285 = vmatmul.mubr.f32.gmra.mrb[0].mxu0 %v65
  %v286 = vpop.f32.mrb[0].mxu0
  %v287 = vadd.f32 %v48, %v286
  %v288 = vpop.f32.mrb[0].mxu0
  %v289 = vadd.f32 %v52, %v288
  %290 = vmatprep.mubr.f32.mxu0 0.0
  %291 = vmatmul.mubr.f32.gmra.mrb[0].mxu0 %v68
  %v292 = vpop.f32.mrb[0].mxu0
  %v293 = vadd.f32 %v48, %v292
  %v294 = vpop.f32.mrb[0].mxu0
  %v295 = vadd.f32 %v52, %v294
  %296 = vmatprep.mubr.f32.mxu0 0.0
  %297 = vmatmul.mubr.f32.gmra.mrb[0].mxu0 %v71
  %v298 = vpop.f32.mrb[0].mxu0
  %v299 = vadd.f32 %v48, %v298
  %v300 = vpop.f32.mrb[0].mxu0
  %v301 = vadd.f32 %v52, %v300
  %302 = vmatprep.mubr.f32.mxu0 0.0
  %303 = vmatmul.mubr.f32.gmra.mrb[0].mxu0 %v74
  %v304 = vpop.f32.mrb[0].mxu0
  %v305 = vadd.f32 %v48, %v304
  %v306 = vpop.f32.mrb[0].mxu0
  %v307 = vadd.f32 %v52, %v306
  %308 = vmatprep.mubr.f32.mxu0 0.0
  %309 = vmatmul.mubr.f32.gmra.mrb[0].mxu0 %v77
  %v310 = vpop.f32.mrb[0].mxu0
  %v311 = vadd.f32 %v48, %v310
  %v312 = vpop.f32.mrb[0].mxu0
  %v313 = vadd.f32 %v52, %v312
  %314 = vmatprep.mubr.f32.mxu0 0.0
  %315 = vmatmul.mubr.f32.gmra.mrb[0].mxu0 %v80
  %v316 = vpop.f32.mrb[0].mxu0
  %v317 = vadd.f32 %v48, %v316
  %v318 = vpop.f32.mrb[0].mxu0
  %v319 = vadd.f32 %v52, %v318
  %320 = vdwg.mxu0
  %321 = vst [vmem:[#allocation2] sm:$0xff] %v162
  %322 = vst [vmem:[#allocation2 + $0x8] sm:$0xff] %v164
  %323 = vst [vmem:[#allocation2 + $0x10] sm:$0xff] %v275
  %324 = vst [vmem:[#allocation2 + $0x18] sm:$0xff] %v277
  %325 = vst [vmem:[#allocation2 + $0x20] sm:$0xff] %v168
  %326 = vst [vmem:[#allocation2 + $0x28] sm:$0xff] %v170
  %327 = vst [vmem:[#allocation2 + $0x30] sm:$0xff] %v281
  %328 = vst [vmem:[#allocation2 + $0x38] sm:$0xff] %v283
  %329 = vst [vmem:[#allocation2 + $0x40] sm:$0xff] %v174
  %330 = vst [vmem:[#allocation2 + $0x48] sm:$0xff] %v176
  %331 = vst [vmem:[#allocation2 + $0x50] sm:$0xff] %v287
  %332 = vst [vmem:[#allocation2 + $0x58] sm:$0xff] %v289
  %333 = vst [vmem:[#allocation2 + $0x60] sm:$0xff] %v180
  %334 = vst [vmem:[#allocation2 + $0x68] sm:$0xff] %v182
  %335 = vst [vmem:[#allocation2 + $0x70] sm:$0xff] %v293
  %336 = vst [vmem:[#allocation2 + $0x78] sm:$0xff] %v295
  %337 = vst [vmem:[#allocation2 + $0x80] sm:$0xff] %v186
  %338 = vst [vmem:[#allocation2 + $0x88] sm:$0xff] %v188
  %339 = vst [vmem:[#allocation2 + $0x90] sm:$0xff] %v299
  %340 = vst [vmem:[#allocation2 + $0x98] sm:$0xff] %v301
  %341 = vst [vmem:[#allocation2 + $0xa0] sm:$0xff] %v192
  %342 = vst [vmem:[#allocation2 + $0xa8] sm:$0xff] %v194
  %343 = vst [vmem:[#allocation2 + $0xb0] sm:$0xff] %v305
  %344 = vst [vmem:[#allocation2 + $0xb8] sm:$0xff] %v307
  %345 = vst [vmem:[#allocation2 + $0xc0] sm:$0xff] %v198
  %346 = vst [vmem:[#allocation2 + $0xc8] sm:$0xff] %v200
  %347 = vst [vmem:[#allocation2 + $0xd0] sm:$0xff] %v311
  %348 = vst [vmem:[#allocation2 + $0xd8] sm:$0xff] %v313
  %349 = vst [vmem:[#allocation2 + $0xe0] sm:$0xff] %v204
  %350 = vst [vmem:[#allocation2 + $0xe8] sm:$0xff] %v206
  %351 = vst [vmem:[#allocation2 + $0xf0] sm:$0xff] %v317
  %352 = vst [vmem:[#allocation2 + $0xf8] sm:$0xff] %v319
  %s353 = smul.u32 0, 4
  %s354 = smul.addr %s353, 8
  %s355 = scalar_lea.vmem [#allocation2], %s354
  %v356 = vld [vmem:[%s355] sm:$0xff]
  %v357 = vld [vmem:[%s355 + $0x8] sm:$0xff]
  %v358 = vld [vmem:[%s355 + $0x10] sm:$0xff]
  %v359 = vld [vmem:[%s355 + $0x18] sm:$0xff]
  %v360 = vld [vmem:[%s2] sm:$0xff]
  %v361 = vld [vmem:[%s2 + $0x8] sm:$0xff]
  %v362 = vld [vmem:[%s2 + $0x10] sm:$0xff]
  %v363 = vld [vmem:[%s2 + $0x18] sm:$0xff]
  %v364 = vld [vmem:[%s2 + $0x20] sm:$0xff]
  %v365 = vld [vmem:[%s2 + $0x28] sm:$0xff]
  %v366 = vld [vmem:[%s2 + $0x30] sm:$0xff]
  %v367 = vld [vmem:[%s2 + $0x38] sm:$0xff]
  %v368 = vld [vmem:[%s2 + $0x40] sm:$0xff]
  %v369 = vld [vmem:[%s2 + $0x48] sm:$0xff]
  %v370 = vld [vmem:[%s2 + $0x50] sm:$0xff]
  %v371 = vld [vmem:[%s2 + $0x58] sm:$0xff]
  %v372 = vld [vmem:[%s2 + $0x60] sm:$0xff]
  %v373 = vld [vmem:[%s2 + $0x68] sm:$0xff]
  %v374 = vld [vmem:[%s2 + $0x70] sm:$0xff]
  %v375 = vld [vmem:[%s2 + $0x78] sm:$0xff]
  %v376 = vld [vmem:[%s2 + $0x80] sm:$0xff]
  %v377 = vld [vmem:[%s2 + $0x88] sm:$0xff]
  %v378 = vld [vmem:[%s2 + $0x90] sm:$0xff]
  %v379 = vld [vmem:[%s2 + $0x98] sm:$0xff]
  %v380 = vld [vmem:[%s2 + $0xa0] sm:$0xff]
  %v381 = vld [vmem:[%s2 + $0xa8] sm:$0xff]
  %v382 = vld [vmem:[%s2 + $0xb0] sm:$0xff]
  %v383 = vld [vmem:[%s2 + $0xb8] sm:$0xff]
  %v384 = vld [vmem:[%s2 + $0xc0] sm:$0xff]
  %v385 = vld [vmem:[%s2 + $0xc8] sm:$0xff]
  %v386 = vld [vmem:[%s2 + $0xd0] sm:$0xff]
  %v387 = vld [vmem:[%s2 + $0xd8] sm:$0xff]
  %v388 = vld [vmem:[%s2 + $0xe0] sm:$0xff]
  %v389 = vld [vmem:[%s2 + $0xe8] sm:$0xff]
  %v390 = vld [vmem:[%s2 + $0xf0] sm:$0xff]
  %v391 = vld [vmem:[%s2 + $0xf8] sm:$0xff]
  %v392 = vld [vmem:[%s2 + $0x100] sm:$0xff]
  %v393 = vld [vmem:[%s2 + $0x108] sm:$0xff]
  %v394 = vld [vmem:[%s2 + $0x110] sm:$0xff]
  %v395 = vld [vmem:[%s2 + $0x118] sm:$0xff]
  %v396 = vld [vmem:[%s2 + $0x120] sm:$0xff]
  %v397 = vld [vmem:[%s2 + $0x128] sm:$0xff]
  %v398 = vld [vmem:[%s2 + $0x130] sm:$0xff]
  %v399 = vld [vmem:[%s2 + $0x138] sm:$0xff]
  %v400 = vld [vmem:[%s2 + $0x140] sm:$0xff]
  %v401 = vld [vmem:[%s2 + $0x148] sm:$0xff]
  %v402 = vld [vmem:[%s2 + $0x150] sm:$0xff]
  %v403 = vld [vmem:[%s2 + $0x158] sm:$0xff]
  %v404 = vld [vmem:[%s2 + $0x160] sm:$0xff]
  %v405 = vld [vmem:[%s2 + $0x168] sm:$0xff]
  %v406 = vld [vmem:[%s2 + $0x170] sm:$0xff]
  %v407 = vld [vmem:[%s2 + $0x178] sm:$0xff]
  %v408 = vld [vmem:[%s2 + $0x180] sm:$0xff]
  %v409 = vld [vmem:[%s2 + $0x188] sm:$0xff]
  %v410 = vld [vmem:[%s2 + $0x190] sm:$0xff]
  %v411 = vld [vmem:[%s2 + $0x198] sm:$0xff]
  %v412 = vld [vmem:[%s2 + $0x1a0] sm:$0xff]
  %v413 = vld [vmem:[%s2 + $0x1a8] sm:$0xff]
  %v414 = vld [vmem:[%s2 + $0x1b0] sm:$0xff]
  %v415 = vld [vmem:[%s2 + $0x1b8] sm:$0xff]
  %v416 = vld [vmem:[%s2 + $0x1c0] sm:$0xff]
  %v417 = vld [vmem:[%s2 + $0x1c8] sm:$0xff]
  %v418 = vld [vmem:[%s2 + $0x1d0] sm:$0xff]
  %v419 = vld [vmem:[%s2 + $0x1d8] sm:$0xff]
  %v420 = vld [vmem:[%s2 + $0x1e0] sm:$0xff]
  %v421 = vld [vmem:[%s2 + $0x1e8] sm:$0xff]
  %v422 = vld [vmem:[%s2 + $0x1f0] sm:$0xff]
  %v423 = vld [vmem:[%s2 + $0x1f8] sm:$0xff]
  %424 = vmatprep.subr.mxu0 %v361
  %425 = vmatpush1.msra.mxu0 %v360
  %426 = vmatprep.subr.mxu0 %v365
  %427 = vmatpush1.msra.mxu0 %v364
  %428 = vmatprep.subr.mxu0 %v369
  %429 = vmatpush1.msra.mxu0 %v368
  %430 = vmatprep.subr.mxu0 %v373
  %431 = vmatpush1.msra.mxu0 %v372
  %432 = vmatprep.subr.mxu0 %v377
  %433 = vmatpush1.msra.mxu0 %v376
  %434 = vmatprep.subr.mxu0 %v381
  %435 = vmatpush1.msra.mxu0 %v380
  %436 = vmatprep.subr.mxu0 %v385
  %437 = vmatpush1.msra.mxu0 %v384
  %438 = vmatprep.subr.mxu0 %v389
  %439 = vmatpush1.msra.mxu0 %v388
  %440 = vmatprep.subr.mxu0 %v393
  %441 = vmatpush1.msra.mxu0 %v392
  %442 = vmatprep.subr.mxu0 %v397
  %443 = vmatpush1.msra.mxu0 %v396
  %444 = vmatprep.subr.mxu0 %v401
  %445 = vmatpush1.msra.mxu0 %v400
  %446 = vmatprep.subr.mxu0 %v405
  %447 = vmatpush1.msra.mxu0 %v404
  %448 = vmatprep.subr.mxu0 %v409
  %449 = vmatpush1.msra.mxu0 %v408
  %450 = vmatprep.subr.mxu0 %v413
  %451 = vmatpush1.msra.mxu0 %v412
  %452 = vmatprep.subr.mxu0 %v417
  %453 = vmatpush1.msra.mxu0 %v416
  %454 = vmatprep.subr.mxu0 %v421
  %455 = vmatpush1.msra.mxu0 %v420
  %456 = vmatprep.subr.mxu0 0.0
  %457 = vmatpush1.msra.mxu0 0.0
  %458 = vmatprep.subr.mxu0 0.0
  %459 = vmatpush1.msra.mxu0 0.0
  %460 = vmatprep.subr.mxu0 0.0
  %461 = vmatpush1.msra.mxu0 0.0
  %462 = vmatprep.subr.mxu0 0.0
  %463 = vmatpush1.msra.mxu0 0.0
  %464 = vmatprep.subr.mxu0 0.0
  %465 = vmatpush1.msra.mxu0 0.0
  %466 = vmatprep.subr.mxu0 0.0
  %467 = vmatpush1.msra.mxu0 0.0
  %468 = vmatprep.subr.mxu0 0.0
  %469 = vmatpush1.msra.mxu0 0.0
  %470 = vmatprep.subr.mxu0 0.0
  %471 = vmatpush1.msra.mxu0 0.0
  %472 = vmatprep.subr.mxu0 0.0
  %473 = vmatpush1.msra.mxu0 0.0
  %474 = vmatprep.subr.mxu0 0.0
  %475 = vmatpush1.msra.mxu0 0.0
  %476 = vmatprep.subr.mxu0 0.0
  %477 = vmatpush1.msra.mxu0 0.0
  %478 = vmatprep.subr.mxu0 0.0
  %479 = vmatpush1.msra.mxu0 0.0
  %480 = vmatprep.subr.mxu0 0.0
  %481 = vmatpush1.msra.mxu0 0.0
  %482 = vmatprep.subr.mxu0 0.0
  %483 = vmatpush1.msra.mxu0 0.0
  %484 = vmatprep.subr.mxu0 0.0
  %485 = vmatpush1.msra.mxu0 0.0
  %486 = vmatprep.subr.mxu0 0.0
  %487 = vmatpush1.msra.mxu0 0.0
  %488 = vmatprep.mubr.f32.mxu0 0.0
  %489 = vmatmul.mubr.f32.gmra.mrb[0].mxu0 0.0
  %v490 = vpop.f32.mrb[0].mxu0
  %v491 = vadd.f32 0.0, %v490
  %v492 = vpop.f32.mrb[0].mxu0
  %v493 = vadd.f32 0.0, %v492
  %494 = vdwg.mxu0
  %495 = vmatprep.subr.mxu0 %v363
  %496 = vmatpush1.msra.mxu0 %v362
  %497 = vmatprep.subr.mxu0 %v367
  %498 = vmatpush1.msra.mxu0 %v366
  %499 = vmatprep.subr.mxu0 %v371
  %500 = vmatpush1.msra.mxu0 %v370
  %501 = vmatprep.subr.mxu0 %v375
  %502 = vmatpush1.msra.mxu0 %v374
  %503 = vmatprep.subr.mxu0 %v379
  %504 = vmatpush1.msra.mxu0 %v378
  %505 = vmatprep.subr.mxu0 %v383
  %506 = vmatpush1.msra.mxu0 %v382
  %507 = vmatprep.subr.mxu0 %v387
  %508 = vmatpush1.msra.mxu0 %v386
  %509 = vmatprep.subr.mxu0 %v391
  %510 = vmatpush1.msra.mxu0 %v390
  %511 = vmatprep.subr.mxu0 %v395
  %512 = vmatpush1.msra.mxu0 %v394
  %513 = vmatprep.subr.mxu0 %v399
  %514 = vmatpush1.msra.mxu0 %v398
  %515 = vmatprep.subr.mxu0 %v403
  %516 = vmatpush1.msra.mxu0 %v402
  %517 = vmatprep.subr.mxu0 %v407
  %518 = vmatpush1.msra.mxu0 %v406
  %519 = vmatprep.subr.mxu0 %v411
  %520 = vmatpush1.msra.mxu0 %v410
  %521 = vmatprep.subr.mxu0 %v415
  %522 = vmatpush1.msra.mxu0 %v414
  %523 = vmatprep.subr.mxu0 %v419
  %524 = vmatpush1.msra.mxu0 %v418
  %525 = vmatprep.subr.mxu0 %v423
  %526 = vmatpush1.msra.mxu0 %v422
  %527 = vmatprep.subr.mxu0 0.0
  %528 = vmatpush1.msra.mxu0 0.0
  %529 = vmatprep.subr.mxu0 0.0
  %530 = vmatpush1.msra.mxu0 0.0
  %531 = vmatprep.subr.mxu0 0.0
  %532 = vmatpush1.msra.mxu0 0.0
  %533 = vmatprep.subr.mxu0 0.0
  %534 = vmatpush1.msra.mxu0 0.0
  %535 = vmatprep.subr.mxu0 0.0
  %536 = vmatpush1.msra.mxu0 0.0
  %537 = vmatprep.subr.mxu0 0.0
  %538 = vmatpush1.msra.mxu0 0.0
  %539 = vmatprep.subr.mxu0 0.0
  %540 = vmatpush1.msra.mxu0 0.0
  %541 = vmatprep.subr.mxu0 0.0
  %542 = vmatpush1.msra.mxu0 0.0
  %543 = vmatprep.subr.mxu0 0.0
  %544 = vmatpush1.msra.mxu0 0.0
  %545 = vmatprep.subr.mxu0 0.0
  %546 = vmatpush1.msra.mxu0 0.0
  %547 = vmatprep.subr.mxu0 0.0
  %548 = vmatpush1.msra.mxu0 0.0
  %549 = vmatprep.subr.mxu0 0.0
  %550 = vmatpush1.msra.mxu0 0.0
  %551 = vmatprep.subr.mxu0 0.0
  %552 = vmatpush1.msra.mxu0 0.0
  %553 = vmatprep.subr.mxu0 0.0
  %554 = vmatpush1.msra.mxu0 0.0
  %555 = vmatprep.subr.mxu0 0.0
  %556 = vmatpush1.msra.mxu0 0.0
  %557 = vmatprep.subr.mxu0 0.0
  %558 = vmatpush1.msra.mxu0 0.0
  %559 = vmatprep.mubr.f32.mxu0 0.0
  %560 = vmatmul.mubr.f32.gmra.mrb[0].mxu0 0.0
  %v561 = vpop.f32.mrb[0].mxu0
  %v562 = vadd.f32 0.0, %v561
  %v563 = vpop.f32.mrb[0].mxu0
  %v564 = vadd.f32 0.0, %v563
  %565 = vdwg.mxu0
  %v566 = vadd.f32 %v356, %v491
  %v567 = vadd.f32 %v357, %v493
  %v568 = vadd.f32 %v358, %v562
  %v569 = vadd.f32 %v359, %v564
  %v570 = vxor.u32 %v566, 2147483648
  %v571 = vxor.u32 %v567, 2147483648
  %v572 = vmul.f32 %v570, 1.442695
  %v573 = vpow.pop %v572
  %v574 = vmul.f32 %v571, 1.442695
  %v575 = vpow.pop %v574
  %v576 = vadd.f32 %v573, 1.0
  %v577 = vadd.f32 %v575, 1.0
  %v578 = vrcp.pop %v576
  %v579 = vmul.f32 1.0, %v578
  %v580 = vrcp.pop %v577
  %v581 = vmul.f32 1.0, %v580
  %v582 = vtanh.pop %v569
  %v583 = vmul.f32 %v581, 0.0
  %v584 = vmul.f32 %v579, %v582
  %v585 = vadd.f32 %v583, %v584
  %v586 = vxor.u32 %v568, 2147483648
  %v587 = vmul.f32 %v586, 1.442695
  %v588 = vpow.pop %v587
  %v589 = vadd.f32 %v588, 1.0
  %v590 = vrcp.pop %v589
  %v591 = vmul.f32 1.0, %v590
  %v592 = vtanh.pop %v585
  %v593 = vmul.f32 %v591, %v592
  %s594 = smul.u32 1, 4
  %s595 = smul.addr %s594, 8
  %s596 = scalar_lea.vmem [#allocation2], %s595
  %v597 = vld [vmem:[%s596] sm:$0xff]
  %v598 = vld [vmem:[%s596 + $0x8] sm:$0xff]
  %v599 = vld [vmem:[%s596 + $0x10] sm:$0xff]
  %v600 = vld [vmem:[%s596 + $0x18] sm:$0xff]
  %601 = vmatprep.subr.mxu0 %v361
  %602 = vmatpush1.msra.mxu0 %v360
  %603 = vmatprep.subr.mxu0 %v365
  %604 = vmatpush1.msra.mxu0 %v364
  %605 = vmatprep.subr.mxu0 %v369
  %606 = vmatpush1.msra.mxu0 %v368
  %607 = vmatprep.subr.mxu0 %v373
  %608 = vmatpush1.msra.mxu0 %v372
  %609 = vmatprep.subr.mxu0 %v377
  %610 = vmatpush1.msra.mxu0 %v376
  %611 = vmatprep.subr.mxu0 %v381
  %612 = vmatpush1.msra.mxu0 %v380
  %613 = vmatprep.subr.mxu0 %v385
  %614 = vmatpush1.msra.mxu0 %v384
  %615 = vmatprep.subr.mxu0 %v389
  %616 = vmatpush1.msra.mxu0 %v388
  %617 = vmatprep.subr.mxu0 %v393
  %618 = vmatpush1.msra.mxu0 %v392
  %619 = vmatprep.subr.mxu0 %v397
  %620 = vmatpush1.msra.mxu0 %v396
  %621 = vmatprep.subr.mxu0 %v401
  %622 = vmatpush1.msra.mxu0 %v400
  %623 = vmatprep.subr.mxu0 %v405
  %624 = vmatpush1.msra.mxu0 %v404
  %625 = vmatprep.subr.mxu0 %v409
  %626 = vmatpush1.msra.mxu0 %v408
  %627 = vmatprep.subr.mxu0 %v413
  %628 = vmatpush1.msra.mxu0 %v412
  %629 = vmatprep.subr.mxu0 %v417
  %630 = vmatpush1.msra.mxu0 %v416
  %631 = vmatprep.subr.mxu0 %v421
  %632 = vmatpush1.msra.mxu0 %v420
  %633 = vmatprep.subr.mxu0 0.0
  %634 = vmatpush1.msra.mxu0 0.0
  %635 = vmatprep.subr.mxu0 0.0
  %636 = vmatpush1.msra.mxu0 0.0
  %637 = vmatprep.subr.mxu0 0.0
  %638 = vmatpush1.msra.mxu0 0.0
  %639 = vmatprep.subr.mxu0 0.0
  %640 = vmatpush1.msra.mxu0 0.0
  %641 = vmatprep.subr.mxu0 0.0
  %642 = vmatpush1.msra.mxu0 0.0
  %643 = vmatprep.subr.mxu0 0.0
  %644 = vmatpush1.msra.mxu0 0.0
  %645 = vmatprep.subr.mxu0 0.0
  %646 = vmatpush1.msra.mxu0 0.0
  %647 = vmatprep.subr.mxu0 0.0
  %648 = vmatpush1.msra.mxu0 0.0
  %649 = vmatprep.subr.mxu0 0.0
  %650 = vmatpush1.msra.mxu0 0.0
  %651 = vmatprep.subr.mxu0 0.0
  %652 = vmatpush1.msra.mxu0 0.0
  %653 = vmatprep.subr.mxu0 0.0
  %654 = vmatpush1.msra.mxu0 0.0
  %655 = vmatprep.subr.mxu0 0.0
  %656 = vmatpush1.msra.mxu0 0.0
  %657 = vmatprep.subr.mxu0 0.0
  %658 = vmatpush1.msra.mxu0 0.0
  %659 = vmatprep.subr.mxu0 0.0
  %660 = vmatpush1.msra.mxu0 0.0
  %661 = vmatprep.subr.mxu0 0.0
  %662 = vmatpush1.msra.mxu0 0.0
  %663 = vmatprep.subr.mxu0 0.0
  %664 = vmatpush1.msra.mxu0 0.0
  %665 = vmatprep.mubr.f32.mxu0 0.0
  %666 = vmatmul.mubr.f32.gmra.mrb[0].mxu0 %v593
  %v667 = vpop.f32.mrb[0].mxu0
  %v668 = vadd.f32 0.0, %v667
  %v669 = vpop.f32.mrb[0].mxu0
  %v670 = vadd.f32 0.0, %v669
  %671 = vdwg.mxu0
  %672 = vmatprep.subr.mxu0 %v363
  %673 = vmatpush1.msra.mxu0 %v362
  %674 = vmatprep.subr.mxu0 %v367
  %675 = vmatpush1.msra.mxu0 %v366
  %676 = vmatprep.subr.mxu0 %v371
  %677 = vmatpush1.msra.mxu0 %v370
  %678 = vmatprep.subr.mxu0 %v375
  %679 = vmatpush1.msra.mxu0 %v374
  %680 = vmatprep.subr.mxu0 %v379
  %681 = vmatpush1.msra.mxu0 %v378
  %682 = vmatprep.subr.mxu0 %v383
  %683 = vmatpush1.msra.mxu0 %v382
  %684 = vmatprep.subr.mxu0 %v387
  %685 = vmatpush1.msra.mxu0 %v386
  %686 = vmatprep.subr.mxu0 %v391
  %687 = vmatpush1.msra.mxu0 %v390
  %688 = vmatprep.subr.mxu0 %v395
  %689 = vmatpush1.msra.mxu0 %v394
  %690 = vmatprep.subr.mxu0 %v399
  %691 = vmatpush1.msra.mxu0 %v398
  %692 = vmatprep.subr.mxu0 %v403
  %693 = vmatpush1.msra.mxu0 %v402
  %694 = vmatprep.subr.mxu0 %v407
  %695 = vmatpush1.msra.mxu0 %v406
  %696 = vmatprep.subr.mxu0 %v411
  %697 = vmatpush1.msra.mxu0 %v410
  %698 = vmatprep.subr.mxu0 %v415
  %699 = vmatpush1.msra.mxu0 %v414
  %700 = vmatprep.subr.mxu0 %v419
  %701 = vmatpush1.msra.mxu0 %v418
  %702 = vmatprep.subr.mxu0 %v423
  %703 = vmatpush1.msra.mxu0 %v422
  %704 = vmatprep.subr.mxu0 0.0
  %705 = vmatpush1.msra.mxu0 0.0
  %706 = vmatprep.subr.mxu0 0.0
  %707 = vmatpush1.msra.mxu0 0.0
  %708 = vmatprep.subr.mxu0 0.0
  %709 = vmatpush1.msra.mxu0 0.0
  %710 = vmatprep.subr.mxu0 0.0
  %711 = vmatpush1.msra.mxu0 0.0
  %712 = vmatprep.subr.mxu0 0.0
  %713 = vmatpush1.msra.mxu0 0.0
  %714 = vmatprep.subr.mxu0 0.0
  %715 = vmatpush1.msra.mxu0 0.0
  %716 = vmatprep.subr.mxu0 0.0
  %717 = vmatpush1.msra.mxu0 0.0
  %718 = vmatprep.subr.mxu0 0.0
  %719 = vmatpush1.msra.mxu0 0.0
  %720 = vmatprep.subr.mxu0 0.0
  %721 = vmatpush1.msra.mxu0 0.0
  %722 = vmatprep.subr.mxu0 0.0
  %723 = vmatpush1.msra.mxu0 0.0
  %724 = vmatprep.subr.mxu0 0.0
  %725 = vmatpush1.msra.mxu0 0.0
  %726 = vmatprep.subr.mxu0 0.0
  %727 = vmatpush1.msra.mxu0 0.0
  %728 = vmatprep.subr.mxu0 0.0
  %729 = vmatpush1.msra.mxu0 0.0
  %730 = vmatprep.subr.mxu0 0.0
  %731 = vmatpush1.msra.mxu0 0.0
  %732 = vmatprep.subr.mxu0 0.0
  %733 = vmatpush1.msra.mxu0 0.0
  %734 = vmatprep.subr.mxu0 0.0
  %735 = vmatpush1.msra.mxu0 0.0
  %736 = vmatprep.mubr.f32.mxu0 0.0
  %737 = vmatmul.mubr.f32.gmra.mrb[0].mxu0 %v593
  %v738 = vpop.f32.mrb[0].mxu0
  %v739 = vadd.f32 0.0, %v738
  %v740 = vpop.f32.mrb[0].mxu0
  %v741 = vadd.f32 0.0, %v740
  %742 = vdwg.mxu0
  %v743 = vadd.f32 %v597, %v668
  %v744 = vadd.f32 %v598, %v670
  %v745 = vadd.f32 %v599, %v739
  %v746 = vadd.f32 %v600, %v741
  %v747 = vxor.u32 %v743, 2147483648
  %v748 = vxor.u32 %v744, 2147483648
  %v749 = vmul.f32 %v747, 1.442695
  %v750 = vpow.pop %v749
  %v751 = vmul.f32 %v748, 1.442695
  %v752 = vpow.pop %v751
  %v753 = vadd.f32 %v750, 1.0
  %v754 = vadd.f32 %v752, 1.0
  %v755 = vrcp.pop %v753
  %v756 = vmul.f32 1.0, %v755
  %v757 = vrcp.pop %v754
  %v758 = vmul.f32 1.0, %v757
  %v759 = vtanh.pop %v746
  %v760 = vmul.f32 %v758, %v585
  %v761 = vmul.f32 %v756, %v759
  %v762 = vadd.f32 %v760, %v761
  %v763 = vxor.u32 %v745, 2147483648
  %v764 = vmul.f32 %v763, 1.442695
  %v765 = vpow.pop %v764
  %v766 = vadd.f32 %v765, 1.0
  %v767 = vrcp.pop %v766
  %v768 = vmul.f32 1.0, %v767
  %v769 = vtanh.pop %v762
  %v770 = vmul.f32 %v768, %v769
  %s771 = smul.u32 2, 4
  %s772 = smul.addr %s771, 8
  %s773 = scalar_lea.vmem [#allocation2], %s772
  %v774 = vld [vmem:[%s773] sm:$0xff]
  %v775 = vld [vmem:[%s773 + $0x8] sm:$0xff]
  %v776 = vld [vmem:[%s773 + $0x10] sm:$0xff]
  %v777 = vld [vmem:[%s773 + $0x18] sm:$0xff]
  %778 = vmatprep.subr.mxu0 %v361
  %779 = vmatpush1.msra.mxu0 %v360
  %780 = vmatprep.subr.mxu0 %v365
  %781 = vmatpush1.msra.mxu0 %v364
  %782 = vmatprep.subr.mxu0 %v369
  %783 = vmatpush1.msra.mxu0 %v368
  %784 = vmatprep.subr.mxu0 %v373
  %785 = vmatpush1.msra.mxu0 %v372
  %786 = vmatprep.subr.mxu0 %v377
  %787 = vmatpush1.msra.mxu0 %v376
  %788 = vmatprep.subr.mxu0 %v381
  %789 = vmatpush1.msra.mxu0 %v380
  %790 = vmatprep.subr.mxu0 %v385
  %791 = vmatpush1.msra.mxu0 %v384
  %792 = vmatprep.subr.mxu0 %v389
  %793 = vmatpush1.msra.mxu0 %v388
  %794 = vmatprep.subr.mxu0 %v393
  %795 = vmatpush1.msra.mxu0 %v392
  %796 = vmatprep.subr.mxu0 %v397
  %797 = vmatpush1.msra.mxu0 %v396
  %798 = vmatprep.subr.mxu0 %v401
  %799 = vmatpush1.msra.mxu0 %v400
  %800 = vmatprep.subr.mxu0 %v405
  %801 = vmatpush1.msra.mxu0 %v404
  %802 = vmatprep.subr.mxu0 %v409
  %803 = vmatpush1.msra.mxu0 %v408
  %804 = vmatprep.subr.mxu0 %v413
  %805 = vmatpush1.msra.mxu0 %v412
  %806 = vmatprep.subr.mxu0 %v417
  %807 = vmatpush1.msra.mxu0 %v416
  %808 = vmatprep.subr.mxu0 %v421
  %809 = vmatpush1.msra.mxu0 %v420
  %810 = vmatprep.subr.mxu0 0.0
  %811 = vmatpush1.msra.mxu0 0.0
  %812 = vmatprep.subr.mxu0 0.0
  %813 = vmatpush1.msra.mxu0 0.0
  %814 = vmatprep.subr.mxu0 0.0
  %815 = vmatpush1.msra.mxu0 0.0
  %816 = vmatprep.subr.mxu0 0.0
  %817 = vmatpush1.msra.mxu0 0.0
  %818 = vmatprep.subr.mxu0 0.0
  %819 = vmatpush1.msra.mxu0 0.0
  %820 = vmatprep.subr.mxu0 0.0
  %821 = vmatpush1.msra.mxu0 0.0
  %822 = vmatprep.subr.mxu0 0.0
  %823 = vmatpush1.msra.mxu0 0.0
  %824 = vmatprep.subr.mxu0 0.0
  %825 = vmatpush1.msra.mxu0 0.0
  %826 = vmatprep.subr.mxu0 0.0
  %827 = vmatpush1.msra.mxu0 0.0
  %828 = vmatprep.subr.mxu0 0.0
  %829 = vmatpush1.msra.mxu0 0.0
  %830 = vmatprep.subr.mxu0 0.0
  %831 = vmatpush1.msra.mxu0 0.0
  %832 = vmatprep.subr.mxu0 0.0
  %833 = vmatpush1.msra.mxu0 0.0
  %834 = vmatprep.subr.mxu0 0.0
  %835 = vmatpush1.msra.mxu0 0.0
  %836 = vmatprep.subr.mxu0 0.0
  %837 = vmatpush1.msra.mxu0 0.0
  %838 = vmatprep.subr.mxu0 0.0
  %839 = vmatpush1.msra.mxu0 0.0
  %840 = vmatprep.subr.mxu0 0.0
  %841 = vmatpush1.msra.mxu0 0.0
  %842 = vmatprep.mubr.f32.mxu0 0.0
  %843 = vmatmul.mubr.f32.gmra.mrb[0].mxu0 %v770
  %v844 = vpop.f32.mrb[0].mxu0
  %v845 = vadd.f32 0.0, %v844
  %v846 = vpop.f32.mrb[0].mxu0
  %v847 = vadd.f32 0.0, %v846
  %848 = vdwg.mxu0
  %849 = vmatprep.subr.mxu0 %v363
  %850 = vmatpush1.msra.mxu0 %v362
  %851 = vmatprep.subr.mxu0 %v367
  %852 = vmatpush1.msra.mxu0 %v366
  %853 = vmatprep.subr.mxu0 %v371
  %854 = vmatpush1.msra.mxu0 %v370
  %855 = vmatprep.subr.mxu0 %v375
  %856 = vmatpush1.msra.mxu0 %v374
  %857 = vmatprep.subr.mxu0 %v379
  %858 = vmatpush1.msra.mxu0 %v378
  %859 = vmatprep.subr.mxu0 %v383
  %860 = vmatpush1.msra.mxu0 %v382
  %861 = vmatprep.subr.mxu0 %v387
  %862 = vmatpush1.msra.mxu0 %v386
  %863 = vmatprep.subr.mxu0 %v391
  %864 = vmatpush1.msra.mxu0 %v390
  %865 = vmatprep.subr.mxu0 %v395
  %866 = vmatpush1.msra.mxu0 %v394
  %867 = vmatprep.subr.mxu0 %v399
  %868 = vmatpush1.msra.mxu0 %v398
  %869 = vmatprep.subr.mxu0 %v403
  %870 = vmatpush1.msra.mxu0 %v402
  %871 = vmatprep.subr.mxu0 %v407
  %872 = vmatpush1.msra.mxu0 %v406
  %873 = vmatprep.subr.mxu0 %v411
  %874 = vmatpush1.msra.mxu0 %v410
  %875 = vmatprep.subr.mxu0 %v415
  %876 = vmatpush1.msra.mxu0 %v414
  %877 = vmatprep.subr.mxu0 %v419
  %878 = vmatpush1.msra.mxu0 %v418
  %879 = vmatprep.subr.mxu0 %v423
  %880 = vmatpush1.msra.mxu0 %v422
  %881 = vmatprep.subr.mxu0 0.0
  %882 = vmatpush1.msra.mxu0 0.0
  %883 = vmatprep.subr.mxu0 0.0
  %884 = vmatpush1.msra.mxu0 0.0
  %885 = vmatprep.subr.mxu0 0.0
  %886 = vmatpush1.msra.mxu0 0.0
  %887 = vmatprep.subr.mxu0 0.0
  %888 = vmatpush1.msra.mxu0 0.0
  %889 = vmatprep.subr.mxu0 0.0
  %890 = vmatpush1.msra.mxu0 0.0
  %891 = vmatprep.subr.mxu0 0.0
  %892 = vmatpush1.msra.mxu0 0.0
  %893 = vmatprep.subr.mxu0 0.0
  %894 = vmatpush1.msra.mxu0 0.0
  %895 = vmatprep.subr.mxu0 0.0
  %896 = vmatpush1.msra.mxu0 0.0
  %897 = vmatprep.subr.mxu0 0.0
  %898 = vmatpush1.msra.mxu0 0.0
  %899 = vmatprep.subr.mxu0 0.0
  %900 = vmatpush1.msra.mxu0 0.0
  %901 = vmatprep.subr.mxu0 0.0
  %902 = vmatpush1.msra.mxu0 0.0
  %903 = vmatprep.subr.mxu0 0.0
  %904 = vmatpush1.msra.mxu0 0.0
  %905 = vmatprep.subr.mxu0 0.0
  %906 = vmatpush1.msra.mxu0 0.0
  %907 = vmatprep.subr.mxu0 0.0
  %908 = vmatpush1.msra.mxu0 0.0
  %909 = vmatprep.subr.mxu0 0.0
  %910 = vmatpush1.msra.mxu0 0.0
  %911 = vmatprep.subr.mxu0 0.0
  %912 = vmatpush1.msra.mxu0 0.0
  %913 = vmatprep.mubr.f32.mxu0 0.0
  %914 = vmatmul.mubr.f32.gmra.mrb[0].mxu0 %v770
  %v915 = vpop.f32.mrb[0].mxu0
  %v916 = vadd.f32 0.0, %v915
  %v917 = vpop.f32.mrb[0].mxu0
  %v918 = vadd.f32 0.0, %v917
  %919 = vdwg.mxu0
  %v920 = vadd.f32 %v774, %v845
  %v921 = vadd.f32 %v775, %v847
  %v922 = vadd.f32 %v776, %v916
  %v923 = vadd.f32 %v777, %v918
  %v924 = vxor.u32 %v920, 2147483648
  %v925 = vxor.u32 %v921, 2147483648
  %v926 = vmul.f32 %v924, 1.442695
  %v927 = vpow.pop %v926
  %v928 = vmul.f32 %v925, 1.442695
  %v929 = vpow.pop %v928
  %v930 = vadd.f32 %v927, 1.0
  %v931 = vadd.f32 %v929, 1.0
  %v932 = vrcp.pop %v930
  %v933 = vmul.f32 1.0, %v932
  %v934 = vrcp.pop %v931
  %v935 = vmul.f32 1.0, %v934
  %v936 = vtanh.pop %v923
  %v937 = vmul.f32 %v935, %v762
  %v938 = vmul.f32 %v933, %v936
  %v939 = vadd.f32 %v937, %v938
  %v940 = vxor.u32 %v922, 2147483648
  %v941 = vmul.f32 %v940, 1.442695
  %v942 = vpow.pop %v941
  %v943 = vadd.f32 %v942, 1.0
  %v944 = vrcp.pop %v943
  %v945 = vmul.f32 1.0, %v944
  %v946 = vtanh.pop %v939
  %v947 = vmul.f32 %v945, %v946
  %s948 = smul.u32 3, 4
  %s949 = smul.addr %s948, 8
  %s950 = scalar_lea.vmem [#allocation2], %s949
  %v951 = vld [vmem:[%s950] sm:$0xff]
  %v952 = vld [vmem:[%s950 + $0x8] sm:$0xff]
  %v953 = vld [vmem:[%s950 + $0x10] sm:$0xff]
  %v954 = vld [vmem:[%s950 + $0x18] sm:$0xff]
  %955 = vmatprep.subr.mxu0 %v361
  %956 = vmatpush1.msra.mxu0 %v360
  %957 = vmatprep.subr.mxu0 %v365
  %958 = vmatpush1.msra.mxu0 %v364
  %959 = vmatprep.subr.mxu0 %v369
  %960 = vmatpush1.msra.mxu0 %v368
  %961 = vmatprep.subr.mxu0 %v373
  %962 = vmatpush1.msra.mxu0 %v372
  %963 = vmatprep.subr.mxu0 %v377
  %964 = vmatpush1.msra.mxu0 %v376
  %965 = vmatprep.subr.mxu0 %v381
  %966 = vmatpush1.msra.mxu0 %v380
  %967 = vmatprep.subr.mxu0 %v385
  %968 = vmatpush1.msra.mxu0 %v384
  %969 = vmatprep.subr.mxu0 %v389
  %970 = vmatpush1.msra.mxu0 %v388
  %971 = vmatprep.subr.mxu0 %v393
  %972 = vmatpush1.msra.mxu0 %v392
  %973 = vmatprep.subr.mxu0 %v397
  %974 = vmatpush1.msra.mxu0 %v396
  %975 = vmatprep.subr.mxu0 %v401
  %976 = vmatpush1.msra.mxu0 %v400
  %977 = vmatprep.subr.mxu0 %v405
  %978 = vmatpush1.msra.mxu0 %v404
  %979 = vmatprep.subr.mxu0 %v409
  %980 = vmatpush1.msra.mxu0 %v408
  %981 = vmatprep.subr.mxu0 %v413
  %982 = vmatpush1.msra.mxu0 %v412
  %983 = vmatprep.subr.mxu0 %v417
  %984 = vmatpush1.msra.mxu0 %v416
  %985 = vmatprep.subr.mxu0 %v421
  %986 = vmatpush1.msra.mxu0 %v420
  %987 = vmatprep.subr.mxu0 0.0
  %988 = vmatpush1.msra.mxu0 0.0
  %989 = vmatprep.subr.mxu0 0.0
  %990 = vmatpush1.msra.mxu0 0.0
  %991 = vmatprep.subr.mxu0 0.0
  %992 = vmatpush1.msra.mxu0 0.0
  %993 = vmatprep.subr.mxu0 0.0
  %994 = vmatpush1.msra.mxu0 0.0
  %995 = vmatprep.subr.mxu0 0.0
  %996 = vmatpush1.msra.mxu0 0.0
  %997 = vmatprep.subr.mxu0 0.0
  %998 = vmatpush1.msra.mxu0 0.0
  %999 = vmatprep.subr.mxu0 0.0
  %1000 = vmatpush1.msra.mxu0 0.0
  %1001 = vmatprep.subr.mxu0 0.0
  %1002 = vmatpush1.msra.mxu0 0.0
  %1003 = vmatprep.subr.mxu0 0.0
  %1004 = vmatpush1.msra.mxu0 0.0
  %1005 = vmatprep.subr.mxu0 0.0
  %1006 = vmatpush1.msra.mxu0 0.0
  %1007 = vmatprep.subr.mxu0 0.0
  %1008 = vmatpush1.msra.mxu0 0.0
  %1009 = vmatprep.subr.mxu0 0.0
  %1010 = vmatpush1.msra.mxu0 0.0
  %1011 = vmatprep.subr.mxu0 0.0
  %1012 = vmatpush1.msra.mxu0 0.0
  %1013 = vmatprep.subr.mxu0 0.0
  %1014 = vmatpush1.msra.mxu0 0.0
  %1015 = vmatprep.subr.mxu0 0.0
  %1016 = vmatpush1.msra.mxu0 0.0
  %1017 = vmatprep.subr.mxu0 0.0
  %1018 = vmatpush1.msra.mxu0 0.0
  %1019 = vmatprep.mubr.f32.mxu0 0.0
  %1020 = vmatmul.mubr.f32.gmra.mrb[0].mxu0 %v947
  %v1021 = vpop.f32.mrb[0].mxu0
  %v1022 = vadd.f32 0.0, %v1021
  %v1023 = vpop.f32.mrb[0].mxu0
  %v1024 = vadd.f32 0.0, %v1023
  %1025 = vdwg.mxu0
  %1026 = vmatprep.subr.mxu0 %v363
  %1027 = vmatpush1.msra.mxu0 %v362
  %1028 = vmatprep.subr.mxu0 %v367
  %1029 = vmatpush1.msra.mxu0 %v366
  %1030 = vmatprep.subr.mxu0 %v371
  %1031 = vmatpush1.msra.mxu0 %v370
  %1032 = vmatprep.subr.mxu0 %v375
  %1033 = vmatpush1.msra.mxu0 %v374
  %1034 = vmatprep.subr.mxu0 %v379
  %1035 = vmatpush1.msra.mxu0 %v378
  %1036 = vmatprep.subr.mxu0 %v383
  %1037 = vmatpush1.msra.mxu0 %v382
  %1038 = vmatprep.subr.mxu0 %v387
  %1039 = vmatpush1.msra.mxu0 %v386
  %1040 = vmatprep.subr.mxu0 %v391
  %1041 = vmatpush1.msra.mxu0 %v390
  %1042 = vmatprep.subr.mxu0 %v395
  %1043 = vmatpush1.msra.mxu0 %v394
  %1044 = vmatprep.subr.mxu0 %v399
  %1045 = vmatpush1.msra.mxu0 %v398
  %1046 = vmatprep.subr.mxu0 %v403
  %1047 = vmatpush1.msra.mxu0 %v402
  %1048 = vmatprep.subr.mxu0 %v407
  %1049 = vmatpush1.msra.mxu0 %v406
  %1050 = vmatprep.subr.mxu0 %v411
  %1051 = vmatpush1.msra.mxu0 %v410
  %1052 = vmatprep.subr.mxu0 %v415
  %1053 = vmatpush1.msra.mxu0 %v414
  %1054 = vmatprep.subr.mxu0 %v419
  %1055 = vmatpush1.msra.mxu0 %v418
  %1056 = vmatprep.subr.mxu0 %v423
  %1057 = vmatpush1.msra.mxu0 %v422
  %1058 = vmatprep.subr.mxu0 0.0
  %1059 = vmatpush1.msra.mxu0 0.0
  %1060 = vmatprep.subr.mxu0 0.0
  %1061 = vmatpush1.msra.mxu0 0.0
  %1062 = vmatprep.subr.mxu0 0.0
  %1063 = vmatpush1.msra.mxu0 0.0
  %1064 = vmatprep.subr.mxu0 0.0
  %1065 = vmatpush1.msra.mxu0 0.0
  %1066 = vmatprep.subr.mxu0 0.0
  %1067 = vmatpush1.msra.mxu0 0.0
  %1068 = vmatprep.subr.mxu0 0.0
  %1069 = vmatpush1.msra.mxu0 0.0
  %1070 = vmatprep.subr.mxu0 0.0
  %1071 = vmatpush1.msra.mxu0 0.0
  %1072 = vmatprep.subr.mxu0 0.0
  %1073 = vmatpush1.msra.mxu0 0.0
  %1074 = vmatprep.subr.mxu0 0.0
  %1075 = vmatpush1.msra.mxu0 0.0
  %1076 = vmatprep.subr.mxu0 0.0
  %1077 = vmatpush1.msra.mxu0 0.0
  %1078 = vmatprep.subr.mxu0 0.0
  %1079 = vmatpush1.msra.mxu0 0.0
  %1080 = vmatprep.subr.mxu0 0.0
  %1081 = vmatpush1.msra.mxu0 0.0
  %1082 = vmatprep.subr.mxu0 0.0
  %1083 = vmatpush1.msra.mxu0 0.0
  %1084 = vmatprep.subr.mxu0 0.0
  %1085 = vmatpush1.msra.mxu0 0.0
  %1086 = vmatprep.subr.mxu0 0.0
  %1087 = vmatpush1.msra.mxu0 0.0
  %1088 = vmatprep.subr.mxu0 0.0
  %1089 = vmatpush1.msra.mxu0 0.0
  %1090 = vmatprep.mubr.f32.mxu0 0.0
  %1091 = vmatmul.mubr.f32.gmra.mrb[0].mxu0 %v947
  %v1092 = vpop.f32.mrb[0].mxu0
  %v1093 = vadd.f32 0.0, %v1092
  %v1094 = vpop.f32.mrb[0].mxu0
  %v1095 = vadd.f32 0.0, %v1094
  %1096 = vdwg.mxu0
  %v1097 = vadd.f32 %v951, %v1022
  %v1098 = vadd.f32 %v952, %v1024
  %v1099 = vadd.f32 %v953, %v1093
  %v1100 = vadd.f32 %v954, %v1095
  %v1101 = vxor.u32 %v1097, 2147483648
  %v1102 = vxor.u32 %v1098, 2147483648
  %v1103 = vmul.f32 %v1101, 1.442695
  %v1104 = vpow.pop %v1103
  %v1105 = vmul.f32 %v1102, 1.442695
  %v1106 = vpow.pop %v1105
  %v1107 = vadd.f32 %v1104, 1.0
  %v1108 = vadd.f32 %v1106, 1.0
  %v1109 = vrcp.pop %v1107
  %v1110 = vmul.f32 1.0, %v1109
  %v1111 = vrcp.pop %v1108
  %v1112 = vmul.f32 1.0, %v1111
  %v1113 = vtanh.pop %v1100
  %v1114 = vmul.f32 %v1112, %v939
  %v1115 = vmul.f32 %v1110, %v1113
  %v1116 = vadd.f32 %v1114, %v1115
  %v1117 = vxor.u32 %v1099, 2147483648
  %v1118 = vmul.f32 %v1117, 1.442695
  %v1119 = vpow.pop %v1118
  %v1120 = vadd.f32 %v1119, 1.0
  %v1121 = vrcp.pop %v1120
  %v1122 = vmul.f32 1.0, %v1121
  %v1123 = vtanh.pop %v1116
  %v1124 = vmul.f32 %v1122, %v1123
  %s1125 = smul.u32 4, 4
  %s1126 = smul.addr %s1125, 8
  %s1127 = scalar_lea.vmem [#allocation2], %s1126
  %v1128 = vld [vmem:[%s1127] sm:$0xff]
  %v1129 = vld [vmem:[%s1127 + $0x8] sm:$0xff]
  %v1130 = vld [vmem:[%s1127 + $0x10] sm:$0xff]
  %v1131 = vld [vmem:[%s1127 + $0x18] sm:$0xff]
  %1132 = vmatprep.subr.mxu0 %v361
  %1133 = vmatpush1.msra.mxu0 %v360
  %1134 = vmatprep.subr.mxu0 %v365
  %1135 = vmatpush1.msra.mxu0 %v364
  %1136 = vmatprep.subr.mxu0 %v369
  %1137 = vmatpush1.msra.mxu0 %v368
  %1138 = vmatprep.subr.mxu0 %v373
  %1139 = vmatpush1.msra.mxu0 %v372
  %1140 = vmatprep.subr.mxu0 %v377
  %1141 = vmatpush1.msra.mxu0 %v376
  %1142 = vmatprep.subr.mxu0 %v381
  %1143 = vmatpush1.msra.mxu0 %v380
  %1144 = vmatprep.subr.mxu0 %v385
  %1145 = vmatpush1.msra.mxu0 %v384
  %1146 = vmatprep.subr.mxu0 %v389
  %1147 = vmatpush1.msra.mxu0 %v388
  %1148 = vmatprep.subr.mxu0 %v393
  %1149 = vmatpush1.msra.mxu0 %v392
  %1150 = vmatprep.subr.mxu0 %v397
  %1151 = vmatpush1.msra.mxu0 %v396
  %1152 = vmatprep.subr.mxu0 %v401
  %1153 = vmatpush1.msra.mxu0 %v400
  %1154 = vmatprep.subr.mxu0 %v405
  %1155 = vmatpush1.msra.mxu0 %v404
  %1156 = vmatprep.subr.mxu0 %v409
  %1157 = vmatpush1.msra.mxu0 %v408
  %1158 = vmatprep.subr.mxu0 %v413
  %1159 = vmatpush1.msra.mxu0 %v412
  %1160 = vmatprep.subr.mxu0 %v417
  %1161 = vmatpush1.msra.mxu0 %v416
  %1162 = vmatprep.subr.mxu0 %v421
  %1163 = vmatpush1.msra.mxu0 %v420
  %1164 = vmatprep.subr.mxu0 0.0
  %1165 = vmatpush1.msra.mxu0 0.0
  %1166 = vmatprep.subr.mxu0 0.0
  %1167 = vmatpush1.msra.mxu0 0.0
  %1168 = vmatprep.subr.mxu0 0.0
  %1169 = vmatpush1.msra.mxu0 0.0
  %1170 = vmatprep.subr.mxu0 0.0
  %1171 = vmatpush1.msra.mxu0 0.0
  %1172 = vmatprep.subr.mxu0 0.0
  %1173 = vmatpush1.msra.mxu0 0.0
  %1174 = vmatprep.subr.mxu0 0.0
  %1175 = vmatpush1.msra.mxu0 0.0
  %1176 = vmatprep.subr.mxu0 0.0
  %1177 = vmatpush1.msra.mxu0 0.0
  %1178 = vmatprep.subr.mxu0 0.0
  %1179 = vmatpush1.msra.mxu0 0.0
  %1180 = vmatprep.subr.mxu0 0.0
  %1181 = vmatpush1.msra.mxu0 0.0
  %1182 = vmatprep.subr.mxu0 0.0
  %1183 = vmatpush1.msra.mxu0 0.0
  %1184 = vmatprep.subr.mxu0 0.0
  %1185 = vmatpush1.msra.mxu0 0.0
  %1186 = vmatprep.subr.mxu0 0.0
  %1187 = vmatpush1.msra.mxu0 0.0
  %1188 = vmatprep.subr.mxu0 0.0
  %1189 = vmatpush1.msra.mxu0 0.0
  %1190 = vmatprep.subr.mxu0 0.0
  %1191 = vmatpush1.msra.mxu0 0.0
  %1192 = vmatprep.subr.mxu0 0.0
  %1193 = vmatpush1.msra.mxu0 0.0
  %1194 = vmatprep.subr.mxu0 0.0
  %1195 = vmatpush1.msra.mxu0 0.0
  %1196 = vmatprep.mubr.f32.mxu0 0.0
  %1197 = vmatmul.mubr.f32.gmra.mrb[0].mxu0 %v1124
  %v1198 = vpop.f32.mrb[0].mxu0
  %v1199 = vadd.f32 0.0, %v1198
  %v1200 = vpop.f32.mrb[0].mxu0
  %v1201 = vadd.f32 0.0, %v1200
  %1202 = vdwg.mxu0
  %1203 = vmatprep.subr.mxu0 %v363
  %1204 = vmatpush1.msra.mxu0 %v362
  %1205 = vmatprep.subr.mxu0 %v367
  %1206 = vmatpush1.msra.mxu0 %v366
  %1207 = vmatprep.subr.mxu0 %v371
  %1208 = vmatpush1.msra.mxu0 %v370
  %1209 = vmatprep.subr.mxu0 %v375
  %1210 = vmatpush1.msra.mxu0 %v374
  %1211 = vmatprep.subr.mxu0 %v379
  %1212 = vmatpush1.msra.mxu0 %v378
  %1213 = vmatprep.subr.mxu0 %v383
  %1214 = vmatpush1.msra.mxu0 %v382
  %1215 = vmatprep.subr.mxu0 %v387
  %1216 = vmatpush1.msra.mxu0 %v386
  %1217 = vmatprep.subr.mxu0 %v391
  %1218 = vmatpush1.msra.mxu0 %v390
  %1219 = vmatprep.subr.mxu0 %v395
  %1220 = vmatpush1.msra.mxu0 %v394
  %1221 = vmatprep.subr.mxu0 %v399
  %1222 = vmatpush1.msra.mxu0 %v398
  %1223 = vmatprep.subr.mxu0 %v403
  %1224 = vmatpush1.msra.mxu0 %v402
  %1225 = vmatprep.subr.mxu0 %v407
  %1226 = vmatpush1.msra.mxu0 %v406
  %1227 = vmatprep.subr.mxu0 %v411
  %1228 = vmatpush1.msra.mxu0 %v410
  %1229 = vmatprep.subr.mxu0 %v415
  %1230 = vmatpush1.msra.mxu0 %v414
  %1231 = vmatprep.subr.mxu0 %v419
  %1232 = vmatpush1.msra.mxu0 %v418
  %1233 = vmatprep.subr.mxu0 %v423
  %1234 = vmatpush1.msra.mxu0 %v422
  %1235 = vmatprep.subr.mxu0 0.0
  %1236 = vmatpush1.msra.mxu0 0.0
  %1237 = vmatprep.subr.mxu0 0.0
  %1238 = vmatpush1.msra.mxu0 0.0
  %1239 = vmatprep.subr.mxu0 0.0
  %1240 = vmatpush1.msra.mxu0 0.0
  %1241 = vmatprep.subr.mxu0 0.0
  %1242 = vmatpush1.msra.mxu0 0.0
  %1243 = vmatprep.subr.mxu0 0.0
  %1244 = vmatpush1.msra.mxu0 0.0
  %1245 = vmatprep.subr.mxu0 0.0
  %1246 = vmatpush1.msra.mxu0 0.0
  %1247 = vmatprep.subr.mxu0 0.0
  %1248 = vmatpush1.msra.mxu0 0.0
  %1249 = vmatprep.subr.mxu0 0.0
  %1250 = vmatpush1.msra.mxu0 0.0
  %1251 = vmatprep.subr.mxu0 0.0
  %1252 = vmatpush1.msra.mxu0 0.0
  %1253 = vmatprep.subr.mxu0 0.0
  %1254 = vmatpush1.msra.mxu0 0.0
  %1255 = vmatprep.subr.mxu0 0.0
  %1256 = vmatpush1.msra.mxu0 0.0
  %1257 = vmatprep.subr.mxu0 0.0
  %1258 = vmatpush1.msra.mxu0 0.0
  %1259 = vmatprep.subr.mxu0 0.0
  %1260 = vmatpush1.msra.mxu0 0.0
  %1261 = vmatprep.subr.mxu0 0.0
  %1262 = vmatpush1.msra.mxu0 0.0
  %1263 = vmatprep.subr.mxu0 0.0
  %1264 = vmatpush1.msra.mxu0 0.0
  %1265 = vmatprep.subr.mxu0 0.0
  %1266 = vmatpush1.msra.mxu0 0.0
  %1267 = vmatprep.mubr.f32.mxu0 0.0
  %1268 = vmatmul.mubr.f32.gmra.mrb[0].mxu0 %v1124
  %v1269 = vpop.f32.mrb[0].mxu0
  %v1270 = vadd.f32 0.0, %v1269
  %v1271 = vpop.f32.mrb[0].mxu0
  %v1272 = vadd.f32 0.0, %v1271
  %1273 = vdwg.mxu0
  %v1274 = vadd.f32 %v1128, %v1199
  %v1275 = vadd.f32 %v1129, %v1201
  %v1276 = vadd.f32 %v1130, %v1270
  %v1277 = vadd.f32 %v1131, %v1272
  %v1278 = vxor.u32 %v1274, 2147483648
  %v1279 = vxor.u32 %v1275, 2147483648
  %v1280 = vmul.f32 %v1278, 1.442695
  %v1281 = vpow.pop %v1280
  %v1282 = vmul.f32 %v1279, 1.442695
  %v1283 = vpow.pop %v1282
  %v1284 = vadd.f32 %v1281, 1.0
  %v1285 = vadd.f32 %v1283, 1.0
  %v1286 = vrcp.pop %v1284
  %v1287 = vmul.f32 1.0, %v1286
  %v1288 = vrcp.pop %v1285
  %v1289 = vmul.f32 1.0, %v1288
  %v1290 = vtanh.pop %v1277
  %v1291 = vmul.f32 %v1289, %v1116
  %v1292 = vmul.f32 %v1287, %v1290
  %v1293 = vadd.f32 %v1291, %v1292
  %v1294 = vxor.u32 %v1276, 2147483648
  %v1295 = vmul.f32 %v1294, 1.442695
  %v1296 = vpow.pop %v1295
  %v1297 = vadd.f32 %v1296, 1.0
  %v1298 = vrcp.pop %v1297
  %v1299 = vmul.f32 1.0, %v1298
  %v1300 = vtanh.pop %v1293
  %v1301 = vmul.f32 %v1299, %v1300
  %s1302 = smul.u32 5, 4
  %s1303 = smul.addr %s1302, 8
  %s1304 = scalar_lea.vmem [#allocation2], %s1303
  %v1305 = vld [vmem:[%s1304] sm:$0xff]
  %v1306 = vld [vmem:[%s1304 + $0x8] sm:$0xff]
  %v1307 = vld [vmem:[%s1304 + $0x10] sm:$0xff]
  %v1308 = vld [vmem:[%s1304 + $0x18] sm:$0xff]
  %1309 = vmatprep.subr.mxu0 %v361
  %1310 = vmatpush1.msra.mxu0 %v360
  %1311 = vmatprep.subr.mxu0 %v365
  %1312 = vmatpush1.msra.mxu0 %v364
  %1313 = vmatprep.subr.mxu0 %v369
  %1314 = vmatpush1.msra.mxu0 %v368
  %1315 = vmatprep.subr.mxu0 %v373
  %1316 = vmatpush1.msra.mxu0 %v372
  %1317 = vmatprep.subr.mxu0 %v377
  %1318 = vmatpush1.msra.mxu0 %v376
  %1319 = vmatprep.subr.mxu0 %v381
  %1320 = vmatpush1.msra.mxu0 %v380
  %1321 = vmatprep.subr.mxu0 %v385
  %1322 = vmatpush1.msra.mxu0 %v384
  %1323 = vmatprep.subr.mxu0 %v389
  %1324 = vmatpush1.msra.mxu0 %v388
  %1325 = vmatprep.subr.mxu0 %v393
  %1326 = vmatpush1.msra.mxu0 %v392
  %1327 = vmatprep.subr.mxu0 %v397
  %1328 = vmatpush1.msra.mxu0 %v396
  %1329 = vmatprep.subr.mxu0 %v401
  %1330 = vmatpush1.msra.mxu0 %v400
  %1331 = vmatprep.subr.mxu0 %v405
  %1332 = vmatpush1.msra.mxu0 %v404
  %1333 = vmatprep.subr.mxu0 %v409
  %1334 = vmatpush1.msra.mxu0 %v408
  %1335 = vmatprep.subr.mxu0 %v413
  %1336 = vmatpush1.msra.mxu0 %v412
  %1337 = vmatprep.subr.mxu0 %v417
  %1338 = vmatpush1.msra.mxu0 %v416
  %1339 = vmatprep.subr.mxu0 %v421
  %1340 = vmatpush1.msra.mxu0 %v420
  %1341 = vmatprep.subr.mxu0 0.0
  %1342 = vmatpush1.msra.mxu0 0.0
  %1343 = vmatprep.subr.mxu0 0.0
  %1344 = vmatpush1.msra.mxu0 0.0
  %1345 = vmatprep.subr.mxu0 0.0
  %1346 = vmatpush1.msra.mxu0 0.0
  %1347 = vmatprep.subr.mxu0 0.0
  %1348 = vmatpush1.msra.mxu0 0.0
  %1349 = vmatprep.subr.mxu0 0.0
  %1350 = vmatpush1.msra.mxu0 0.0
  %1351 = vmatprep.subr.mxu0 0.0
  %1352 = vmatpush1.msra.mxu0 0.0
  %1353 = vmatprep.subr.mxu0 0.0
  %1354 = vmatpush1.msra.mxu0 0.0
  %1355 = vmatprep.subr.mxu0 0.0
  %1356 = vmatpush1.msra.mxu0 0.0
  %1357 = vmatprep.subr.mxu0 0.0
  %1358 = vmatpush1.msra.mxu0 0.0
  %1359 = vmatprep.subr.mxu0 0.0
  %1360 = vmatpush1.msra.mxu0 0.0
  %1361 = vmatprep.subr.mxu0 0.0
  %1362 = vmatpush1.msra.mxu0 0.0
  %1363 = vmatprep.subr.mxu0 0.0
  %1364 = vmatpush1.msra.mxu0 0.0
  %1365 = vmatprep.subr.mxu0 0.0
  %1366 = vmatpush1.msra.mxu0 0.0
  %1367 = vmatprep.subr.mxu0 0.0
  %1368 = vmatpush1.msra.mxu0 0.0
  %1369 = vmatprep.subr.mxu0 0.0
  %1370 = vmatpush1.msra.mxu0 0.0
  %1371 = vmatprep.subr.mxu0 0.0
  %1372 = vmatpush1.msra.mxu0 0.0
  %1373 = vmatprep.mubr.f32.mxu0 0.0
  %1374 = vmatmul.mubr.f32.gmra.mrb[0].mxu0 %v1301
  %v1375 = vpop.f32.mrb[0].mxu0
  %v1376 = vadd.f32 0.0, %v1375
  %v1377 = vpop.f32.mrb[0].mxu0
  %v1378 = vadd.f32 0.0, %v1377
  %1379 = vdwg.mxu0
  %1380 = vmatprep.subr.mxu0 %v363
  %1381 = vmatpush1.msra.mxu0 %v362
  %1382 = vmatprep.subr.mxu0 %v367
  %1383 = vmatpush1.msra.mxu0 %v366
  %1384 = vmatprep.subr.mxu0 %v371
  %1385 = vmatpush1.msra.mxu0 %v370
  %1386 = vmatprep.subr.mxu0 %v375
  %1387 = vmatpush1.msra.mxu0 %v374
  %1388 = vmatprep.subr.mxu0 %v379
  %1389 = vmatpush1.msra.mxu0 %v378
  %1390 = vmatprep.subr.mxu0 %v383
  %1391 = vmatpush1.msra.mxu0 %v382
  %1392 = vmatprep.subr.mxu0 %v387
  %1393 = vmatpush1.msra.mxu0 %v386
  %1394 = vmatprep.subr.mxu0 %v391
  %1395 = vmatpush1.msra.mxu0 %v390
  %1396 = vmatprep.subr.mxu0 %v395
  %1397 = vmatpush1.msra.mxu0 %v394
  %1398 = vmatprep.subr.mxu0 %v399
  %1399 = vmatpush1.msra.mxu0 %v398
  %1400 = vmatprep.subr.mxu0 %v403
  %1401 = vmatpush1.msra.mxu0 %v402
  %1402 = vmatprep.subr.mxu0 %v407
  %1403 = vmatpush1.msra.mxu0 %v406
  %1404 = vmatprep.subr.mxu0 %v411
  %1405 = vmatpush1.msra.mxu0 %v410
  %1406 = vmatprep.subr.mxu0 %v415
  %1407 = vmatpush1.msra.mxu0 %v414
  %1408 = vmatprep.subr.mxu0 %v419
  %1409 = vmatpush1.msra.mxu0 %v418
  %1410 = vmatprep.subr.mxu0 %v423
  %1411 = vmatpush1.msra.mxu0 %v422
  %1412 = vmatprep.subr.mxu0 0.0
  %1413 = vmatpush1.msra.mxu0 0.0
  %1414 = vmatprep.subr.mxu0 0.0
  %1415 = vmatpush1.msra.mxu0 0.0
  %1416 = vmatprep.subr.mxu0 0.0
  %1417 = vmatpush1.msra.mxu0 0.0
  %1418 = vmatprep.subr.mxu0 0.0
  %1419 = vmatpush1.msra.mxu0 0.0
  %1420 = vmatprep.subr.mxu0 0.0
  %1421 = vmatpush1.msra.mxu0 0.0
  %1422 = vmatprep.subr.mxu0 0.0
  %1423 = vmatpush1.msra.mxu0 0.0
  %1424 = vmatprep.subr.mxu0 0.0
  %1425 = vmatpush1.msra.mxu0 0.0
  %1426 = vmatprep.subr.mxu0 0.0
  %1427 = vmatpush1.msra.mxu0 0.0
  %1428 = vmatprep.subr.mxu0 0.0
  %1429 = vmatpush1.msra.mxu0 0.0
  %1430 = vmatprep.subr.mxu0 0.0
  %1431 = vmatpush1.msra.mxu0 0.0
  %1432 = vmatprep.subr.mxu0 0.0
  %1433 = vmatpush1.msra.mxu0 0.0
  %1434 = vmatprep.subr.mxu0 0.0
  %1435 = vmatpush1.msra.mxu0 0.0
  %1436 = vmatprep.subr.mxu0 0.0
  %1437 = vmatpush1.msra.mxu0 0.0
  %1438 = vmatprep.subr.mxu0 0.0
  %1439 = vmatpush1.msra.mxu0 0.0
  %1440 = vmatprep.subr.mxu0 0.0
  %1441 = vmatpush1.msra.mxu0 0.0
  %1442 = vmatprep.subr.mxu0 0.0
  %1443 = vmatpush1.msra.mxu0 0.0
  %1444 = vmatprep.mubr.f32.mxu0 0.0
  %1445 = vmatmul.mubr.f32.gmra.mrb[0].mxu0 %v1301
  %v1446 = vpop.f32.mrb[0].mxu0
  %v1447 = vadd.f32 0.0, %v1446
  %v1448 = vpop.f32.mrb[0].mxu0
  %v1449 = vadd.f32 0.0, %v1448
  %1450 = vdwg.mxu0
  %v1451 = vadd.f32 %v1305, %v1376
  %v1452 = vadd.f32 %v1306, %v1378
  %v1453 = vadd.f32 %v1307, %v1447
  %v1454 = vadd.f32 %v1308, %v1449
  %v1455 = vxor.u32 %v1451, 2147483648
  %v1456 = vxor.u32 %v1452, 2147483648
  %v1457 = vmul.f32 %v1455, 1.442695
  %v1458 = vpow.pop %v1457
  %v1459 = vmul.f32 %v1456, 1.442695
  %v1460 = vpow.pop %v1459
  %v1461 = vadd.f32 %v1458, 1.0
  %v1462 = vadd.f32 %v1460, 1.0
  %v1463 = vrcp.pop %v1461
  %v1464 = vmul.f32 1.0, %v1463
  %v1465 = vrcp.pop %v1462
  %v1466 = vmul.f32 1.0, %v1465
  %v1467 = vtanh.pop %v1454
  %v1468 = vmul.f32 %v1466, %v1293
  %v1469 = vmul.f32 %v1464, %v1467
  %v1470 = vadd.f32 %v1468, %v1469
  %v1471 = vxor.u32 %v1453, 2147483648
  %v1472 = vmul.f32 %v1471, 1.442695
  %v1473 = vpow.pop %v1472
  %v1474 = vadd.f32 %v1473, 1.0
  %v1475 = vrcp.pop %v1474
  %v1476 = vmul.f32 1.0, %v1475
  %v1477 = vtanh.pop %v1470
  %v1478 = vmul.f32 %v1476, %v1477
  %s1479 = smul.u32 6, 4
  %s1480 = smul.addr %s1479, 8
  %s1481 = scalar_lea.vmem [#allocation2], %s1480
  %v1482 = vld [vmem:[%s1481] sm:$0xff]
  %v1483 = vld [vmem:[%s1481 + $0x8] sm:$0xff]
  %v1484 = vld [vmem:[%s1481 + $0x10] sm:$0xff]
  %v1485 = vld [vmem:[%s1481 + $0x18] sm:$0xff]
  %1486 = vmatprep.subr.mxu0 %v361
  %1487 = vmatpush1.msra.mxu0 %v360
  %1488 = vmatprep.subr.mxu0 %v365
  %1489 = vmatpush1.msra.mxu0 %v364
  %1490 = vmatprep.subr.mxu0 %v369
  %1491 = vmatpush1.msra.mxu0 %v368
  %1492 = vmatprep.subr.mxu0 %v373
  %1493 = vmatpush1.msra.mxu0 %v372
  %1494 = vmatprep.subr.mxu0 %v377
  %1495 = vmatpush1.msra.mxu0 %v376
  %1496 = vmatprep.subr.mxu0 %v381
  %1497 = vmatpush1.msra.mxu0 %v380
  %1498 = vmatprep.subr.mxu0 %v385
  %1499 = vmatpush1.msra.mxu0 %v384
  %1500 = vmatprep.subr.mxu0 %v389
  %1501 = vmatpush1.msra.mxu0 %v388
  %1502 = vmatprep.subr.mxu0 %v393
  %1503 = vmatpush1.msra.mxu0 %v392
  %1504 = vmatprep.subr.mxu0 %v397
  %1505 = vmatpush1.msra.mxu0 %v396
  %1506 = vmatprep.subr.mxu0 %v401
  %1507 = vmatpush1.msra.mxu0 %v400
  %1508 = vmatprep.subr.mxu0 %v405
  %1509 = vmatpush1.msra.mxu0 %v404
  %1510 = vmatprep.subr.mxu0 %v409
  %1511 = vmatpush1.msra.mxu0 %v408
  %1512 = vmatprep.subr.mxu0 %v413
  %1513 = vmatpush1.msra.mxu0 %v412
  %1514 = vmatprep.subr.mxu0 %v417
  %1515 = vmatpush1.msra.mxu0 %v416
  %1516 = vmatprep.subr.mxu0 %v421
  %1517 = vmatpush1.msra.mxu0 %v420
  %1518 = vmatprep.subr.mxu0 0.0
  %1519 = vmatpush1.msra.mxu0 0.0
  %1520 = vmatprep.subr.mxu0 0.0
  %1521 = vmatpush1.msra.mxu0 0.0
  %1522 = vmatprep.subr.mxu0 0.0
  %1523 = vmatpush1.msra.mxu0 0.0
  %1524 = vmatprep.subr.mxu0 0.0
  %1525 = vmatpush1.msra.mxu0 0.0
  %1526 = vmatprep.subr.mxu0 0.0
  %1527 = vmatpush1.msra.mxu0 0.0
  %1528 = vmatprep.subr.mxu0 0.0
  %1529 = vmatpush1.msra.mxu0 0.0
  %1530 = vmatprep.subr.mxu0 0.0
  %1531 = vmatpush1.msra.mxu0 0.0
  %1532 = vmatprep.subr.mxu0 0.0
  %1533 = vmatpush1.msra.mxu0 0.0
  %1534 = vmatprep.subr.mxu0 0.0
  %1535 = vmatpush1.msra.mxu0 0.0
  %1536 = vmatprep.subr.mxu0 0.0
  %1537 = vmatpush1.msra.mxu0 0.0
  %1538 = vmatprep.subr.mxu0 0.0
  %1539 = vmatpush1.msra.mxu0 0.0
  %1540 = vmatprep.subr.mxu0 0.0
  %1541 = vmatpush1.msra.mxu0 0.0
  %1542 = vmatprep.subr.mxu0 0.0
  %1543 = vmatpush1.msra.mxu0 0.0
  %1544 = vmatprep.subr.mxu0 0.0
  %1545 = vmatpush1.msra.mxu0 0.0
  %1546 = vmatprep.subr.mxu0 0.0
  %1547 = vmatpush1.msra.mxu0 0.0
  %1548 = vmatprep.subr.mxu0 0.0
  %1549 = vmatpush1.msra.mxu0 0.0
  %1550 = vmatprep.mubr.f32.mxu0 0.0
  %1551 = vmatmul.mubr.f32.gmra.mrb[0].mxu0 %v1478
  %v1552 = vpop.f32.mrb[0].mxu0
  %v1553 = vadd.f32 0.0, %v1552
  %v1554 = vpop.f32.mrb[0].mxu0
  %v1555 = vadd.f32 0.0, %v1554
  %1556 = vdwg.mxu0
  %1557 = vmatprep.subr.mxu0 %v363
  %1558 = vmatpush1.msra.mxu0 %v362
  %1559 = vmatprep.subr.mxu0 %v367
  %1560 = vmatpush1.msra.mxu0 %v366
  %1561 = vmatprep.subr.mxu0 %v371
  %1562 = vmatpush1.msra.mxu0 %v370
  %1563 = vmatprep.subr.mxu0 %v375
  %1564 = vmatpush1.msra.mxu0 %v374
  %1565 = vmatprep.subr.mxu0 %v379
  %1566 = vmatpush1.msra.mxu0 %v378
  %1567 = vmatprep.subr.mxu0 %v383
  %1568 = vmatpush1.msra.mxu0 %v382
  %1569 = vmatprep.subr.mxu0 %v387
  %1570 = vmatpush1.msra.mxu0 %v386
  %1571 = vmatprep.subr.mxu0 %v391
  %1572 = vmatpush1.msra.mxu0 %v390
  %1573 = vmatprep.subr.mxu0 %v395
  %1574 = vmatpush1.msra.mxu0 %v394
  %1575 = vmatprep.subr.mxu0 %v399
  %1576 = vmatpush1.msra.mxu0 %v398
  %1577 = vmatprep.subr.mxu0 %v403
  %1578 = vmatpush1.msra.mxu0 %v402
  %1579 = vmatprep.subr.mxu0 %v407
  %1580 = vmatpush1.msra.mxu0 %v406
  %1581 = vmatprep.subr.mxu0 %v411
  %1582 = vmatpush1.msra.mxu0 %v410
  %1583 = vmatprep.subr.mxu0 %v415
  %1584 = vmatpush1.msra.mxu0 %v414
  %1585 = vmatprep.subr.mxu0 %v419
  %1586 = vmatpush1.msra.mxu0 %v418
  %1587 = vmatprep.subr.mxu0 %v423
  %1588 = vmatpush1.msra.mxu0 %v422
  %1589 = vmatprep.subr.mxu0 0.0
  %1590 = vmatpush1.msra.mxu0 0.0
  %1591 = vmatprep.subr.mxu0 0.0
  %1592 = vmatpush1.msra.mxu0 0.0
  %1593 = vmatprep.subr.mxu0 0.0
  %1594 = vmatpush1.msra.mxu0 0.0
  %1595 = vmatprep.subr.mxu0 0.0
  %1596 = vmatpush1.msra.mxu0 0.0
  %1597 = vmatprep.subr.mxu0 0.0
  %1598 = vmatpush1.msra.mxu0 0.0
  %1599 = vmatprep.subr.mxu0 0.0
  %1600 = vmatpush1.msra.mxu0 0.0
  %1601 = vmatprep.subr.mxu0 0.0
  %1602 = vmatpush1.msra.mxu0 0.0
  %1603 = vmatprep.subr.mxu0 0.0
  %1604 = vmatpush1.msra.mxu0 0.0
  %1605 = vmatprep.subr.mxu0 0.0
  %1606 = vmatpush1.msra.mxu0 0.0
  %1607 = vmatprep.subr.mxu0 0.0
  %1608 = vmatpush1.msra.mxu0 0.0
  %1609 = vmatprep.subr.mxu0 0.0
  %1610 = vmatpush1.msra.mxu0 0.0
  %1611 = vmatprep.subr.mxu0 0.0
  %1612 = vmatpush1.msra.mxu0 0.0
  %1613 = vmatprep.subr.mxu0 0.0
  %1614 = vmatpush1.msra.mxu0 0.0
  %1615 = vmatprep.subr.mxu0 0.0
  %1616 = vmatpush1.msra.mxu0 0.0
  %1617 = vmatprep.subr.mxu0 0.0
  %1618 = vmatpush1.msra.mxu0 0.0
  %1619 = vmatprep.subr.mxu0 0.0
  %1620 = vmatpush1.msra.mxu0 0.0
  %1621 = vmatprep.mubr.f32.mxu0 0.0
  %1622 = vmatmul.mubr.f32.gmra.mrb[0].mxu0 %v1478
  %v1623 = vpop.f32.mrb[0].mxu0
  %v1624 = vadd.f32 0.0, %v1623
  %v1625 = vpop.f32.mrb[0].mxu0
  %v1626 = vadd.f32 0.0, %v1625
  %1627 = vdwg.mxu0
  %v1628 = vadd.f32 %v1482, %v1553
  %v1629 = vadd.f32 %v1483, %v1555
  %v1630 = vadd.f32 %v1484, %v1624
  %v1631 = vadd.f32 %v1485, %v1626
  %v1632 = vxor.u32 %v1628, 2147483648
  %v1633 = vxor.u32 %v1629, 2147483648
  %v1634 = vmul.f32 %v1632, 1.442695
  %v1635 = vpow.pop %v1634
  %v1636 = vmul.f32 %v1633, 1.442695
  %v1637 = vpow.pop %v1636
  %v1638 = vadd.f32 %v1635, 1.0
  %v1639 = vadd.f32 %v1637, 1.0
  %v1640 = vrcp.pop %v1638
  %v1641 = vmul.f32 1.0, %v1640
  %v1642 = vrcp.pop %v1639
  %v1643 = vmul.f32 1.0, %v1642
  %v1644 = vtanh.pop %v1631
  %v1645 = vmul.f32 %v1643, %v1470
  %v1646 = vmul.f32 %v1641, %v1644
  %v1647 = vadd.f32 %v1645, %v1646
  %v1648 = vxor.u32 %v1630, 2147483648
  %v1649 = vmul.f32 %v1648, 1.442695
  %v1650 = vpow.pop %v1649
  %v1651 = vadd.f32 %v1650, 1.0
  %v1652 = vrcp.pop %v1651
  %v1653 = vmul.f32 1.0, %v1652
  %v1654 = vtanh.pop %v1647
  %v1655 = vmul.f32 %v1653, %v1654
  %s1656 = smul.u32 7, 4
  %s1657 = smul.addr %s1656, 8
  %s1658 = scalar_lea.vmem [#allocation2], %s1657
  %v1659 = vld [vmem:[%s1658] sm:$0xff]
  %v1660 = vld [vmem:[%s1658 + $0x8] sm:$0xff]
  %v1661 = vld [vmem:[%s1658 + $0x10] sm:$0xff]
  %v1662 = vld [vmem:[%s1658 + $0x18] sm:$0xff]
  %1663 = vmatprep.subr.mxu0 %v361
  %1664 = vmatpush1.msra.mxu0 %v360
  %1665 = vmatprep.subr.mxu0 %v365
  %1666 = vmatpush1.msra.mxu0 %v364
  %1667 = vmatprep.subr.mxu0 %v369
  %1668 = vmatpush1.msra.mxu0 %v368
  %1669 = vmatprep.subr.mxu0 %v373
  %1670 = vmatpush1.msra.mxu0 %v372
  %1671 = vmatprep.subr.mxu0 %v377
  %1672 = vmatpush1.msra.mxu0 %v376
  %1673 = vmatprep.subr.mxu0 %v381
  %1674 = vmatpush1.msra.mxu0 %v380
  %1675 = vmatprep.subr.mxu0 %v385
  %1676 = vmatpush1.msra.mxu0 %v384
  %1677 = vmatprep.subr.mxu0 %v389
  %1678 = vmatpush1.msra.mxu0 %v388
  %1679 = vmatprep.subr.mxu0 %v393
  %1680 = vmatpush1.msra.mxu0 %v392
  %1681 = vmatprep.subr.mxu0 %v397
  %1682 = vmatpush1.msra.mxu0 %v396
  %1683 = vmatprep.subr.mxu0 %v401
  %1684 = vmatpush1.msra.mxu0 %v400
  %1685 = vmatprep.subr.mxu0 %v405
  %1686 = vmatpush1.msra.mxu0 %v404
  %1687 = vmatprep.subr.mxu0 %v409
  %1688 = vmatpush1.msra.mxu0 %v408
  %1689 = vmatprep.subr.mxu0 %v413
  %1690 = vmatpush1.msra.mxu0 %v412
  %1691 = vmatprep.subr.mxu0 %v417
  %1692 = vmatpush1.msra.mxu0 %v416
  %1693 = vmatprep.subr.mxu0 %v421
  %1694 = vmatpush1.msra.mxu0 %v420
  %1695 = vmatprep.subr.mxu0 0.0
  %1696 = vmatpush1.msra.mxu0 0.0
  %1697 = vmatprep.subr.mxu0 0.0
  %1698 = vmatpush1.msra.mxu0 0.0
  %1699 = vmatprep.subr.mxu0 0.0
  %1700 = vmatpush1.msra.mxu0 0.0
  %1701 = vmatprep.subr.mxu0 0.0
  %1702 = vmatpush1.msra.mxu0 0.0
  %1703 = vmatprep.subr.mxu0 0.0
  %1704 = vmatpush1.msra.mxu0 0.0
  %1705 = vmatprep.subr.mxu0 0.0
  %1706 = vmatpush1.msra.mxu0 0.0
  %1707 = vmatprep.subr.mxu0 0.0
  %1708 = vmatpush1.msra.mxu0 0.0
  %1709 = vmatprep.subr.mxu0 0.0
  %1710 = vmatpush1.msra.mxu0 0.0
  %1711 = vmatprep.subr.mxu0 0.0
  %1712 = vmatpush1.msra.mxu0 0.0
  %1713 = vmatprep.subr.mxu0 0.0
  %1714 = vmatpush1.msra.mxu0 0.0
  %1715 = vmatprep.subr.mxu0 0.0
  %1716 = vmatpush1.msra.mxu0 0.0
  %1717 = vmatprep.subr.mxu0 0.0
  %1718 = vmatpush1.msra.mxu0 0.0
  %1719 = vmatprep.subr.mxu0 0.0
  %1720 = vmatpush1.msra.mxu0 0.0
  %1721 = vmatprep.subr.mxu0 0.0
  %1722 = vmatpush1.msra.mxu0 0.0
  %1723 = vmatprep.subr.mxu0 0.0
  %1724 = vmatpush1.msra.mxu0 0.0
  %1725 = vmatprep.subr.mxu0 0.0
  %1726 = vmatpush1.msra.mxu0 0.0
  %1727 = vmatprep.mubr.f32.mxu0 0.0
  %1728 = vmatmul.mubr.f32.gmra.mrb[0].mxu0 %v1655
  %v1729 = vpop.f32.mrb[0].mxu0
  %v1730 = vadd.f32 0.0, %v1729
  %v1731 = vpop.f32.mrb[0].mxu0
  %v1732 = vadd.f32 0.0, %v1731
  %1733 = vdwg.mxu0
  %1734 = vmatprep.subr.mxu0 %v363
  %1735 = vmatpush1.msra.mxu0 %v362
  %1736 = vmatprep.subr.mxu0 %v367
  %1737 = vmatpush1.msra.mxu0 %v366
  %1738 = vmatprep.subr.mxu0 %v371
  %1739 = vmatpush1.msra.mxu0 %v370
  %1740 = vmatprep.subr.mxu0 %v375
  %1741 = vmatpush1.msra.mxu0 %v374
  %1742 = vmatprep.subr.mxu0 %v379
  %1743 = vmatpush1.msra.mxu0 %v378
  %1744 = vmatprep.subr.mxu0 %v383
  %1745 = vmatpush1.msra.mxu0 %v382
  %1746 = vmatprep.subr.mxu0 %v387
  %1747 = vmatpush1.msra.mxu0 %v386
  %1748 = vmatprep.subr.mxu0 %v391
  %1749 = vmatpush1.msra.mxu0 %v390
  %1750 = vmatprep.subr.mxu0 %v395
  %1751 = vmatpush1.msra.mxu0 %v394
  %1752 = vmatprep.subr.mxu0 %v399
  %1753 = vmatpush1.msra.mxu0 %v398
  %1754 = vmatprep.subr.mxu0 %v403
  %1755 = vmatpush1.msra.mxu0 %v402
  %1756 = vmatprep.subr.mxu0 %v407
  %1757 = vmatpush1.msra.mxu0 %v406
  %1758 = vmatprep.subr.mxu0 %v411
  %1759 = vmatpush1.msra.mxu0 %v410
  %1760 = vmatprep.subr.mxu0 %v415
  %1761 = vmatpush1.msra.mxu0 %v414
  %1762 = vmatprep.subr.mxu0 %v419
  %1763 = vmatpush1.msra.mxu0 %v418
  %1764 = vmatprep.subr.mxu0 %v423
  %1765 = vmatpush1.msra.mxu0 %v422
  %1766 = vmatprep.subr.mxu0 0.0
  %1767 = vmatpush1.msra.mxu0 0.0
  %1768 = vmatprep.subr.mxu0 0.0
  %1769 = vmatpush1.msra.mxu0 0.0
  %1770 = vmatprep.subr.mxu0 0.0
  %1771 = vmatpush1.msra.mxu0 0.0
  %1772 = vmatprep.subr.mxu0 0.0
  %1773 = vmatpush1.msra.mxu0 0.0
  %1774 = vmatprep.subr.mxu0 0.0
  %1775 = vmatpush1.msra.mxu0 0.0
  %1776 = vmatprep.subr.mxu0 0.0
  %1777 = vmatpush1.msra.mxu0 0.0
  %1778 = vmatprep.subr.mxu0 0.0
  %1779 = vmatpush1.msra.mxu0 0.0
  %1780 = vmatprep.subr.mxu0 0.0
  %1781 = vmatpush1.msra.mxu0 0.0
  %1782 = vmatprep.subr.mxu0 0.0
  %1783 = vmatpush1.msra.mxu0 0.0
  %1784 = vmatprep.subr.mxu0 0.0
  %1785 = vmatpush1.msra.mxu0 0.0
  %1786 = vmatprep.subr.mxu0 0.0
  %1787 = vmatpush1.msra.mxu0 0.0
  %1788 = vmatprep.subr.mxu0 0.0
  %1789 = vmatpush1.msra.mxu0 0.0
  %1790 = vmatprep.subr.mxu0 0.0
  %1791 = vmatpush1.msra.mxu0 0.0
  %1792 = vmatprep.subr.mxu0 0.0
  %1793 = vmatpush1.msra.mxu0 0.0
  %1794 = vmatprep.subr.mxu0 0.0
  %1795 = vmatpush1.msra.mxu0 0.0
  %1796 = vmatprep.subr.mxu0 0.0
  %1797 = vmatpush1.msra.mxu0 0.0
  %1798 = vmatprep.mubr.f32.mxu0 0.0
  %1799 = vmatmul.mubr.f32.gmra.mrb[0].mxu0 %v1655
  %v1800 = vpop.f32.mrb[0].mxu0
  %v1801 = vadd.f32 0.0, %v1800
  %v1802 = vpop.f32.mrb[0].mxu0
  %v1803 = vadd.f32 0.0, %v1802
  %1804 = vdwg.mxu0
  %v1805 = vadd.f32 %v1659, %v1730
  %v1806 = vadd.f32 %v1660, %v1732
  %v1807 = vadd.f32 %v1661, %v1801
  %v1808 = vadd.f32 %v1662, %v1803
  %v1809 = vxor.u32 %v1805, 2147483648
  %v1810 = vxor.u32 %v1806, 2147483648
  %v1811 = vmul.f32 %v1809, 1.442695
  %v1812 = vpow.pop %v1811
  %v1813 = vmul.f32 %v1810, 1.442695
  %v1814 = vpow.pop %v1813
  %v1815 = vadd.f32 %v1812, 1.0
  %v1816 = vadd.f32 %v1814, 1.0
  %v1817 = vrcp.pop %v1815
  %v1818 = vmul.f32 1.0, %v1817
  %v1819 = vrcp.pop %v1816
  %v1820 = vmul.f32 1.0, %v1819
  %v1821 = vtanh.pop %v1808
  %v1822 = vmul.f32 %v1820, %v1647
  %v1823 = vmul.f32 %v1818, %v1821
  %v1824 = vadd.f32 %v1822, %v1823
  %v1825 = vxor.u32 %v1807, 2147483648
  %v1826 = vmul.f32 %v1825, 1.442695
  %v1827 = vpow.pop %v1826
  %v1828 = vadd.f32 %v1827, 1.0
  %v1829 = vrcp.pop %v1828
  %v1830 = vmul.f32 1.0, %v1829
  %v1831 = vtanh.pop %v1824
  %v1832 = vmul.f32 %v1830, %v1831
  %v1833 = vld [vmem:[%s4] sm:$0xff]
  %v1834 = vld [vmem:[%s4 + $0x8] sm:$0xff]
  %v1835 = vld [vmem:[%s4 + $0x10] sm:$0xff]
  %v1836 = vld [vmem:[%s4 + $0x18] sm:$0xff]
  %v1837 = vld [vmem:[%s4 + $0x20] sm:$0xff]
  %v1838 = vld [vmem:[%s4 + $0x28] sm:$0xff]
  %v1839 = vld [vmem:[%s4 + $0x30] sm:$0xff]
  %v1840 = vld [vmem:[%s4 + $0x38] sm:$0xff]
  %v1841 = vld [vmem:[%s4 + $0x40] sm:$0xff]
  %v1842 = vld [vmem:[%s4 + $0x48] sm:$0xff]
  %v1843 = vld [vmem:[%s4 + $0x50] sm:$0xff]
  %v1844 = vld [vmem:[%s4 + $0x58] sm:$0xff]
  %v1845 = vld [vmem:[%s4 + $0x60] sm:$0xff]
  %v1846 = vld [vmem:[%s4 + $0x68] sm:$0xff]
  %v1847 = vld [vmem:[%s4 + $0x70] sm:$0xff]
  %v1848 = vld [vmem:[%s4 + $0x78] sm:$0xff]
  %v1849 = vld [vmem:[%s5] sm:$0x1]
  %v1851 = vlaneseq
  %v1852 = vshrl.u32 %v1851, 7
  %v1853 = vsub.s32 0, %v1852
  %v1854 = vrot.slane %v1849, %v1853
  %1856 = vmatprep.subr.mxu0 0.0
  %1857 = vmatpush1.msra.mxu0 %v1833
  %1858 = vmatprep.subr.mxu0 0.0
  %1859 = vmatpush1.msra.mxu0 %v1834
  %1860 = vmatprep.subr.mxu0 0.0
  %1861 = vmatpush1.msra.mxu0 %v1835
  %1862 = vmatprep.subr.mxu0 0.0
  %1863 = vmatpush1.msra.mxu0 %v1836
  %1864 = vmatprep.subr.mxu0 0.0
  %1865 = vmatpush1.msra.mxu0 %v1837
  %1866 = vmatprep.subr.mxu0 0.0
  %1867 = vmatpush1.msra.mxu0 %v1838
  %1868 = vmatprep.subr.mxu0 0.0
  %1869 = vmatpush1.msra.mxu0 %v1839
  %1870 = vmatprep.subr.mxu0 0.0
  %1871 = vmatpush1.msra.mxu0 %v1840
  %1872 = vmatprep.subr.mxu0 0.0
  %1873 = vmatpush1.msra.mxu0 %v1841
  %1874 = vmatprep.subr.mxu0 0.0
  %1875 = vmatpush1.msra.mxu0 %v1842
  %1876 = vmatprep.subr.mxu0 0.0
  %1877 = vmatpush1.msra.mxu0 %v1843
  %1878 = vmatprep.subr.mxu0 0.0
  %1879 = vmatpush1.msra.mxu0 %v1844
  %1880 = vmatprep.subr.mxu0 0.0
  %1881 = vmatpush1.msra.mxu0 %v1845
  %1882 = vmatprep.subr.mxu0 0.0
  %1883 = vmatpush1.msra.mxu0 %v1846
  %1884 = vmatprep.subr.mxu0 0.0
  %1885 = vmatpush1.msra.mxu0 %v1847
  %1886 = vmatprep.subr.mxu0 0.0
  %1887 = vmatpush1.msra.mxu0 %v1848
  %1888 = vmatprep.subr.mxu0 0.0
  %1889 = vmatpush1.msra.mxu0 0.0
  %1890 = vmatprep.subr.mxu0 0.0
  %1891 = vmatpush1.msra.mxu0 0.0
  %1892 = vmatprep.subr.mxu0 0.0
  %1893 = vmatpush1.msra.mxu0 0.0
  %1894 = vmatprep.subr.mxu0 0.0
  %1895 = vmatpush1.msra.mxu0 0.0
  %1896 = vmatprep.subr.mxu0 0.0
  %1897 = vmatpush1.msra.mxu0 0.0
  %1898 = vmatprep.subr.mxu0 0.0
  %1899 = vmatpush1.msra.mxu0 0.0
  %1900 = vmatprep.subr.mxu0 0.0
  %1901 = vmatpush1.msra.mxu0 0.0
  %1902 = vmatprep.subr.mxu0 0.0
  %1903 = vmatpush1.msra.mxu0 0.0
  %1904 = vmatprep.subr.mxu0 0.0
  %1905 = vmatpush1.msra.mxu0 0.0
  %1906 = vmatprep.subr.mxu0 0.0
  %1907 = vmatpush1.msra.mxu0 0.0
  %1908 = vmatprep.subr.mxu0 0.0
  %1909 = vmatpush1.msra.mxu0 0.0
  %1910 = vmatprep.subr.mxu0 0.0
  %1911 = vmatpush1.msra.mxu0 0.0
  %1912 = vmatprep.subr.mxu0 0.0
  %1913 = vmatpush1.msra.mxu0 0.0
  %1914 = vmatprep.subr.mxu0 0.0
  %1915 = vmatpush1.msra.mxu0 0.0
  %1916 = vmatprep.subr.mxu0 0.0
  %1917 = vmatpush1.msra.mxu0 0.0
  %1918 = vmatprep.subr.mxu0 0.0
  %1919 = vmatpush1.msra.mxu0 0.0
  %1920 = vmatprep.mubr.f32.mxu0 0.0
  %1921 = vmatmul.mubr.f32.gmra.mrb[0].mxu0 %v1832
  %v1922 = vpop.f32.mrb[0].mxu0
  %v1923 = vadd.f32 %v1854, %v1922
  %v1924 = vpop.f32.mrb[0].mxu0
  %1925 = vdwg.mxu0
  %1926 = vst [vmem:[%s6] sm:$0xff] %v1923
  // Predicated region
  $region26: #{lstm_model_forward.1} parent=0 // pred_check
    _
  $region27: #{lstm_model_forward.1} parent=0 // pred_check_branch
    %1928 = sbr.rel (0) target = $region29
  $region28: #{lstm_model_forward.1} parent=0 // pred_region
    _
  $region29: #{lstm_model_forward.1} parent=0 // pred_fallthru
    _
  // Predicated region
  $region30: #{lstm_model_forward.1} parent=0 // pred_check
    _
  $region31: #{lstm_model_forward.1} parent=0 // pred_check_branch
    %1930 = sbr.rel (0) target = $region33
  $region32: #{lstm_model_forward.1} parent=0 // pred_region
    _
  $region33: #{lstm_model_forward.1} parent=0 // pred_fallthru
    _

</llo_original>
